<compile_context>
chip_gen: v7x
topology: tpu7x:2x2x1
jax: 0.10.0
libtpu: 0.0.40
codegen_flags: <defaults>
</compile_context>

<pallas_src>
import functools
import math

import jax
import jax.numpy as jnp
from jax.experimental import pallas as pl
from jax.experimental.pallas import tpu as pltpu


def _round_up(x, m):
  return (x + m - 1) // m * m


def _pick_time_chunk(T, cap=8):
  """Largest divisor of T that is <= cap (trip count of the unrolled loop)."""
  tt = min(cap, T)
  while T % tt:
    tt -= 1
  return tt


def _bilstm_recurrence_kernel(gx_ref, whh_ref, out_ref, cn_ref, h_sc, c_sc,
                              *, tt_steps, hidden):
  """LSTM recurrence over one time chunk of one direction.

  Grid = (num_dirs ["parallel"], T // TT ["arbitrary"]).

  gx_ref  : (TT, Bp, 4H)  precomputed x @ W_ih^T + bias for this chunk
                          (chunk index already reversed for the bwd direction)
  whh_ref : (H, 4H)       W_hh^T of this direction (gate order i, f, o, g)
  out_ref : (TT, Bp, H)   per-timestep hidden output (original time order)
  cn_ref  : (Bp, H)       final cell state of this direction
  h_sc/c_sc : VMEM (Bp, H) f32 recurrent state, carried across time chunks
  """
  d = pl.program_id(0)
  tc = pl.program_id(1)
  TT = tt_steps
  H = hidden

  @pl.when(tc == 0)
  def _():
    h_sc[...] = jnp.zeros_like(h_sc)
    c_sc[...] = jnp.zeros_like(c_sc)

  def step(tt, carry):
    # Forward direction walks the chunk 0..TT-1; backward walks TT-1..0, so
    # the output is written directly in original time order.
    local = tt * (1 - 2 * d) + d * (TT - 1)
    gates = gx_ref[local].astype(jnp.float32) + jnp.dot(
        h_sc[...].astype(whh_ref.dtype), whh_ref[...],
        preferred_element_type=jnp.float32)                  # (Bp, 4H)
    sig = jax.nn.sigmoid(gates[:, :3 * H])                   # i, f, o
    g_g = jnp.tanh(gates[:, 3 * H:])
    i_g = sig[:, 0 * H:1 * H]
    f_g = sig[:, 1 * H:2 * H]
    o_g = sig[:, 2 * H:3 * H]
    c_new = f_g * c_sc[...] + i_g * g_g
    h_new = o_g * jnp.tanh(c_new)
    h_sc[...] = h_new
    c_sc[...] = c_new
    out_ref[local] = h_new.astype(out_ref.dtype)
    return carry

  jax.lax.fori_loop(0, TT, step, 0, unroll=True)

  @pl.when(tc == pl.num_programs(1) - 1)
  def _():
    cn_ref[...] = c_sc[...].astype(cn_ref.dtype)


def _run_bilstm_layer(x_btd, w_ih_s, w_hh_s, b_s, *, time_chunk=8,
                      matmul_dtype=jnp.float32):
  """One (bi)directional LSTM layer.

  x_btd  : (B, T, I)      batch-first input
  w_ih_s : (D, 4H, I)     per-direction W_ih, gate rows reordered (i,f,o,g)
  w_hh_s : (D, H, 4H)     per-direction W_hh^T, gate cols reordered (i,f,o,g)
  b_s    : (D, 4H)        per-direction b_ih + b_hh, reordered

  Returns out_stacked (D, T, Bp, H) f32 (original time order) and
  c_n (D, Bp, H) f32, with Bp = B rounded up to a multiple of 8.
  """
  B, T, _ = x_btd.shape
  D, G4, _ = w_ih_s.shape
  H = G4 // 4

  Bp = _round_up(B, 8)                      # sublane-align the batch
  if Bp != B:
    x_btd = jnp.pad(x_btd, ((0, Bp - B), (0, 0), (0, 0)))

  # --- Hoisted input projection: one big matmul for all timesteps and both
  # directions, emitted already time-major (no (B,T,D)->(T,B,D) transpose). ---
  gates_x = jnp.einsum('bti,dgi->dtbg', x_btd.astype(jnp.float32), w_ih_s,
                       preferred_element_type=jnp.float32)
  gates_x = gates_x + b_s[:, None, None, :].astype(jnp.float32)  # (D,T,Bp,4H)

  TT = _pick_time_chunk(T, time_chunk)
  nchunks = T // TT

  # Chunk index: forward -> tc, backward -> nchunks-1-tc (pure index
  # arithmetic; no reversed copies in HBM).
  def time_block(d, tc):
    return tc * (1 - 2 * d) + d * (nchunks - 1)

  grid_spec = pltpu.PrefetchScalarGridSpec(
      num_scalar_prefetch=0,
      grid=(D, nchunks),
      in_specs=[
          pl.BlockSpec((None, TT, Bp, G4),
                       lambda d, tc: (d, time_block(d, tc), 0, 0)),
          pl.BlockSpec((None, H, G4), lambda d, tc: (d, 0, 0)),
      ],
      out_specs=[
          pl.BlockSpec((None, TT, Bp, H),
                       lambda d, tc: (d, time_block(d, tc), 0, 0)),
          pl.BlockSpec((None, Bp, H), lambda d, tc: (d, 0, 0)),
      ],
      scratch_shapes=[
          pltpu.VMEM((Bp, H), jnp.float32),
          pltpu.VMEM((Bp, H), jnp.float32),
      ],
  )

  out_stacked, c_n = pl.pallas_call(
      functools.partial(_bilstm_recurrence_kernel, tt_steps=TT, hidden=H),
      out_shape=(jax.ShapeDtypeStruct((D, T, Bp, H), jnp.float32),
                 jax.ShapeDtypeStruct((D, Bp, H), jnp.float32)),
      grid_spec=grid_spec,
      # Direction axis "parallel" (v7x megacore runs fwd/bwd concurrently);
      # the time-chunk axis carries the recurrence ("arbitrary").
      compiler_params=pltpu.CompilerParams(
          dimension_semantics=("parallel", "arbitrary")),
      # TODO(synk): for large H (>= ~512) tile the 4H axis and/or raise
      # vmem_limit_bytes so W_hh^T + the (TT,Bp,4H) gate block fit v7x's
      # 64 MiB VMEM.
  )(gates_x, w_hh_s.astype(matmul_dtype))
  return out_stacked, c_n


def _prep_layer_weights(layer_params):
  """Stack per-direction weights; reorder torch gates (i,f,g,o) -> (i,f,o,g)."""
  wih_l, whh_l, b_l = [], [], []
  for (w_ih, w_hh, b_ih, b_hh) in layer_params:
    G4 = w_ih.shape[0]
    H = G4 // 4
    perm = jnp.concatenate([jnp.arange(0, 2 * H),        # i, f
                            jnp.arange(3 * H, 4 * H),    # o
                            jnp.arange(2 * H, 3 * H)])   # g
    wih_l.append(jnp.asarray(w_ih, jnp.float32)[perm])        # (4H, I)
    whh_l.append(jnp.asarray(w_hh, jnp.float32)[perm].T)      # (H, 4H)
    b_l.append(jnp.asarray(b_ih + b_hh, jnp.float32)[perm])   # (4H,)
  return jnp.stack(wih_l), jnp.stack(whh_l), jnp.stack(b_l)


def init_bilstm_params(key, input_size, hidden_size, num_layers=1,
                       bidirectional=True):
  """Deterministic init matching nn.LSTM shapes / U(-1/sqrt(H), 1/sqrt(H))."""
  if bidirectional:
    hidden_size = hidden_size // 2
  H = hidden_size
  num_dirs = 2 if bidirectional else 1
  bound = 1.0 / math.sqrt(H)
  params = []
  for layer in range(num_layers):
    in_sz = input_size if layer == 0 else H * num_dirs
    layer_params = []
    for _ in range(num_dirs):
      key, k1, k2, k3, k4 = jax.random.split(key, 5)
      w_ih = jax.random.uniform(k1, (4 * H, in_sz), jnp.float32, -bound, bound)
      w_hh = jax.random.uniform(k2, (4 * H, H), jnp.float32, -bound, bound)
      b_ih = jax.random.uniform(k3, (4 * H,), jnp.float32, -bound, bound)
      b_hh = jax.random.uniform(k4, (4 * H,), jnp.float32, -bound, bound)
      layer_params.append((w_ih, w_hh, b_ih, b_hh))
    params.append(layer_params)
  return params


def bilstm_encoder_forward(x_btd, params, *, time_chunk=8,
                           matmul_dtype=jnp.float32):
  """Equivalent of BiLSTMEncoder.forward(input, seq_len) in eval mode.

  x_btd : (B, T, input_size)
  returns (output (B, T, num_dirs*H), (h_n, c_n)) with h_n, c_n of shape
  (num_layers*num_dirs, B, H).
  """
  # TODO(synk): seq_len / pack_padded_sequence semantics are not modeled --
  # the backward direction starts from the padded tail, so this matches
  # nn.LSTM only for full-length sequences.  Inter-layer dropout (training
  # mode) is also not modeled (eval-mode semantics; identity for 1 layer).
  B = x_btd.shape[0]
  h_finals, c_finals = [], []
  layer_in = x_btd
  for layer_params in params:
    w_ih_s, w_hh_s, b_s = _prep_layer_weights(layer_params)
    D, G4 = b_s.shape
    H = G4 // 4
    T = layer_in.shape[1]
    out_stacked, c_n_pad = _run_bilstm_layer(
        layer_in, w_ih_s, w_hh_s, b_s,
        time_chunk=time_chunk, matmul_dtype=matmul_dtype)
    out_stacked = out_stacked[:, :, :B, :]               # drop batch padding
    # (D, T, B, H) -> (B, T, D*H)  (== concat over directions per timestep)
    layer_out = jnp.transpose(out_stacked, (2, 1, 0, 3)).reshape(B, T, D * H)
    # h_n of the forward dir is out[T-1]; of the backward dir it is out[0].
    h_finals.append(out_stacked[0, T - 1])
    if D == 2:
      h_finals.append(out_stacked[1, 0])
    for d in range(D):
      c_finals.append(c_n_pad[d, :B])
    layer_in = layer_out
  h_n = jnp.stack(h_finals, axis=0)
  c_n = jnp.stack(c_finals, axis=0)
  return layer_in, (h_n, c_n)


def _reference_lstm_direction(x_tbi, w_ih, w_hh, b_ih, b_hh):
  """Pure-JAX reference (lax.scan, torch gate order) for sanity checking."""
  H = w_hh.shape[1]
  B = x_tbi.shape[1]

  def step(carry, x_t):
    h, c = carry
    gates = x_t @ w_ih.T + h @ w_hh.T + b_ih + b_hh
    i = jax.nn.sigmoid(gates[:, 0 * H:1 * H])
    f = jax.nn.sigmoid(gates[:, 1 * H:2 * H])
    g = jnp.tanh(gates[:, 2 * H:3 * H])
    o = jax.nn.sigmoid(gates[:, 3 * H:4 * H])
    c_new = f * c + i * g
    h_new = o * jnp.tanh(c_new)
    return (h_new, c_new), h_new

  init = (jnp.zeros((B, H), jnp.float32), jnp.zeros((B, H), jnp.float32))
  (h_n, c_n), outs = jax.lax.scan(step, init, x_tbi)
  return outs, h_n, c_n


if __name__ == "__main__":
  # Small shapes consistent with the module's forward (3-D batch_first input).
  batch, seq, input_size, hidden_size, num_layers = 2, 8, 32, 32, 1

  key = jax.random.PRNGKey(0)
  k_x, k_p = jax.random.split(key)
  x = jax.random.normal(k_x, (batch, seq, input_size), jnp.float32)
  seq_len = jnp.full((batch,), seq, jnp.int32)  # unused by forward(), parity only

  params = init_bilstm_params(k_p, input_size, hidden_size,
                              num_layers=num_layers, bidirectional=True)

  output, (h_n, c_n) = bilstm_encoder_forward(x, params)
  output = jax.block_until_ready(output)
  h_n = jax.block_until_ready(h_n)
  c_n = jax.block_until_ready(c_n)

  # Sanity check against a pure-JAX reference implementation.
  x_tbd = jnp.transpose(x, (1, 0, 2))
  (w_ih_f, w_hh_f, b_ih_f, b_hh_f), (w_ih_b, w_hh_b, b_ih_b, b_hh_b) = params[0]
  ref_f, ref_hf, ref_cf = _reference_lstm_direction(x_tbd, w_ih_f, w_hh_f,
                                                    b_ih_f, b_hh_f)
  ref_b_rev, ref_hb, ref_cb = _reference_lstm_direction(x_tbd[::-1], w_ih_b,
                                                        w_hh_b, b_ih_b, b_hh_b)
  ref_out = jnp.transpose(
      jnp.concatenate([ref_f, ref_b_rev[::-1]], axis=-1), (1, 0, 2))
  ref_hn = jnp.stack([ref_hf, ref_hb], axis=0)
  ref_cn = jnp.stack([ref_cf, ref_cb], axis=0)

  assert output.shape == (batch, seq, hidden_size)
  assert h_n.shape == (num_layers * 2, batch, hidden_size // 2)
  assert c_n.shape == (num_layers * 2, batch, hidden_size // 2)
  assert jnp.allclose(output, ref_out, atol=1e-5, rtol=1e-5)
  assert jnp.allclose(h_n, ref_hn, atol=1e-5, rtol=1e-5)
  assert jnp.allclose(c_n, ref_cn, atol=1e-5, rtol=1e-5)

  print("KERNEL_OK")
</pallas_src>

<mosaic_0001>
module attributes {stable_mosaic.version = 11 : i64} {
  func.func @_bilstm_recurrence_kernel(%arg0: i32, %arg1: i32, %arg2: memref<1x8x8x64xf32, #tpu.memory_space<vmem>>, %arg3: memref<1x16x64xf32, #tpu.memory_space<vmem>>, %arg4: memref<1x8x8x16xf32, #tpu.memory_space<vmem>>, %arg5: memref<1x8x16xf32, #tpu.memory_space<vmem>>, %arg6: memref<8x16xf32, #tpu.memory_space<vmem>>, %arg7: memref<8x16xf32, #tpu.memory_space<vmem>>) attributes {dimension_semantics = [#tpu.dimension_semantics<parallel>, #tpu.dimension_semantics<arbitrary>], iteration_bounds = array<i64: 2, 1>, scalar_prefetch = 0 : i64, scratch_operands = 2 : i64, tpu.core_type = #tpu.core_type<tc>, window_params = [{transform_indices = @transform_0, window_bounds = array<i64: 1, 8, 8, 64>}, {transform_indices = @transform_1, window_bounds = array<i64: 1, 16, 64>}, {transform_indices = @transform_2, window_bounds = array<i64: 1, 8, 8, 16>}, {transform_indices = @transform_3, window_bounds = array<i64: 1, 8, 16>}]} {
    %c0_i32 = arith.constant 0 : i32
    %0 = arith.cmpi eq, %arg1, %c0_i32 : i32
    %1 = arith.extui %0 : i1 to i32
    %c0_i32_0 = arith.constant 0 : i32
    %2 = arith.cmpi ne, %1, %c0_i32_0 : i32
    scf.if %2 {
      %cst_178 = arith.constant 0.000000e+00 : f32
      %294 = vector.broadcast %cst_178 : f32 to vector<8x16xf32>
      %c0_179 = arith.constant 0 : index
      %c0_180 = arith.constant 0 : index
      %295 = vector.load %arg6[%c0_179, %c0_180] : memref<8x16xf32, #tpu.memory_space<vmem>>, vector<8x16xf32>
      tpu.vector_store %arg6[%c0_179, %c0_180], %294 {strides = array<i32>} : memref<8x16xf32, #tpu.memory_space<vmem>>, vector<8x16xf32>,
      %cst_181 = arith.constant 0.000000e+00 : f32
      %296 = vector.broadcast %cst_181 : f32 to vector<8x16xf32>
      %c0_182 = arith.constant 0 : index
      %c0_183 = arith.constant 0 : index
      %297 = vector.load %arg7[%c0_182, %c0_183] : memref<8x16xf32, #tpu.memory_space<vmem>>, vector<8x16xf32>
      tpu.vector_store %arg7[%c0_182, %c0_183], %296 {strides = array<i32>} : memref<8x16xf32, #tpu.memory_space<vmem>>, vector<8x16xf32>,
    } else {
    }
    %c0_i32_1 = arith.constant 0 : i32
    %c2_i32 = arith.constant 2 : i32
    %3 = arith.muli %c2_i32, %arg0 : i32
    %c1_i32 = arith.constant 1 : i32
    %4 = arith.subi %c1_i32, %3 : i32
    %5 = arith.muli %c0_i32_1, %4 : i32
    %c7_i32 = arith.constant 7 : i32
    %6 = arith.muli %arg0, %c7_i32 : i32
    %7 = arith.addi %5, %6 : i32
    %c0 = arith.constant 0 : index
    %8 = arith.index_cast %7 : i32 to index
    %c0_2 = arith.constant 0 : index
    %c0_3 = arith.constant 0 : index
    %9 = vector.load %arg2[%c0, %8, %c0_2, %c0_3] : memref<1x8x8x64xf32, #tpu.memory_space<vmem>>, vector<1x1x8x64xf32>
    %10 = vector.shape_cast %9 : vector<1x1x8x64xf32> to vector<8x64xf32>
    %c0_4 = arith.constant 0 : index
    %c0_5 = arith.constant 0 : index
    %11 = vector.load %arg6[%c0_4, %c0_5] : memref<8x16xf32, #tpu.memory_space<vmem>>, vector<8x16xf32>
    %c0_6 = arith.constant 0 : index
    %c0_7 = arith.constant 0 : index
    %c0_8 = arith.constant 0 : index
    %12 = vector.load %arg3[%c0_6, %c0_7, %c0_8] : memref<1x16x64xf32, #tpu.memory_space<vmem>>, vector<1x16x64xf32>
    %13 = vector.shape_cast %12 : vector<1x16x64xf32> to vector<16x64xf32>
    %cst = arith.constant dense<0.000000e+00> : vector<8x64xf32>
    %14 = tpu.matmul %11, %13, %cst {dimension_numbers = #tpu.dot_dimension_numbers<[1], [0], [0], [1], [0, 0, 1, 1], [], []>} : vector<8x16xf32>, vector<16x64xf32>, vector<8x64xf32> -> vector<8x64xf32>
    %15 = arith.addf %10, %14 : vector<8x64xf32>
    %16 = vector.extract_strided_slice %15 {offsets = [0, 0], sizes = [8, 48], strides = [1, 1]} : vector<8x64xf32> to vector<8x48xf32>
    %17 = arith.negf %16 : vector<8x48xf32>
    %18 = math.exp %17 : vector<8x48xf32>
    %cst_9 = arith.constant 1.000000e+00 : f32
    %19 = vector.broadcast %cst_9 : f32 to vector<8x48xf32>
    %20 = arith.addf %19, %18 : vector<8x48xf32>
    %21 = arith.divf %19, %20 : vector<8x48xf32>
    %22 = vector.extract_strided_slice %15 {offsets = [0, 48], sizes = [8, 16], strides = [1, 1]} : vector<8x64xf32> to vector<8x16xf32>
    %23 = math.tanh %22 : vector<8x16xf32>
    %24 = vector.extract_strided_slice %21 {offsets = [0, 0], sizes = [8, 16], strides = [1, 1]} : vector<8x48xf32> to vector<8x16xf32>
    %25 = vector.extract_strided_slice %21 {offsets = [0, 16], sizes = [8, 16], strides = [1, 1]} : vector<8x48xf32> to vector<8x16xf32>
    %26 = vector.extract_strided_slice %21 {offsets = [0, 32], sizes = [8, 16], strides = [1, 1]} : vector<8x48xf32> to vector<8x16xf32>
    %c0_10 = arith.constant 0 : index
    %c0_11 = arith.constant 0 : index
    %27 = vector.load %arg7[%c0_10, %c0_11] : memref<8x16xf32, #tpu.memory_space<vmem>>, vector<8x16xf32>
    %28 = arith.mulf %25, %27 : vector<8x16xf32>
    %29 = arith.mulf %24, %23 : vector<8x16xf32>
    %30 = arith.addf %28, %29 : vector<8x16xf32>
    %31 = math.tanh %30 : vector<8x16xf32>
    %32 = arith.mulf %26, %31 : vector<8x16xf32>
    %c0_12 = arith.constant 0 : index
    %c0_13 = arith.constant 0 : index
    %33 = vector.load %arg6[%c0_12, %c0_13] : memref<8x16xf32, #tpu.memory_space<vmem>>, vector<8x16xf32>
    tpu.vector_store %arg6[%c0_12, %c0_13], %32 {strides = array<i32>} : memref<8x16xf32, #tpu.memory_space<vmem>>, vector<8x16xf32>,
    %c0_14 = arith.constant 0 : index
    %c0_15 = arith.constant 0 : index
    %34 = vector.load %arg7[%c0_14, %c0_15] : memref<8x16xf32, #tpu.memory_space<vmem>>, vector<8x16xf32>
    tpu.vector_store %arg7[%c0_14, %c0_15], %30 {strides = array<i32>} : memref<8x16xf32, #tpu.memory_space<vmem>>, vector<8x16xf32>,
    %c0_16 = arith.constant 0 : index
    %35 = arith.index_cast %7 : i32 to index
    %c0_17 = arith.constant 0 : index
    %c0_18 = arith.constant 0 : index
    %36 = vector.load %arg4[%c0_16, %35, %c0_17, %c0_18] : memref<1x8x8x16xf32, #tpu.memory_space<vmem>>, vector<1x1x8x16xf32>
    %37 = vector.shape_cast %36 : vector<1x1x8x16xf32> to vector<8x16xf32>
    %38 = vector.shape_cast %32 : vector<8x16xf32> to vector<1x1x8x16xf32>
    tpu.vector_store %arg4[%c0_16, %35, %c0_17, %c0_18], %38 {strides = array<i32>} : memref<1x8x8x16xf32, #tpu.memory_space<vmem>>, vector<1x1x8x16xf32>,
    %c1_i32_19 = arith.constant 1 : i32
    %c2_i32_20 = arith.constant 2 : i32
    %39 = arith.muli %c2_i32_20, %arg0 : i32
    %c1_i32_21 = arith.constant 1 : i32
    %40 = arith.subi %c1_i32_21, %39 : i32
    %41 = arith.muli %c1_i32_19, %40 : i32
    %c7_i32_22 = arith.constant 7 : i32
    %42 = arith.muli %arg0, %c7_i32_22 : i32
    %43 = arith.addi %41, %42 : i32
    %c0_23 = arith.constant 0 : index
    %44 = arith.index_cast %43 : i32 to index
    %c0_24 = arith.constant 0 : index
    %c0_25 = arith.constant 0 : index
    %45 = vector.load %arg2[%c0_23, %44, %c0_24, %c0_25] : memref<1x8x8x64xf32, #tpu.memory_space<vmem>>, vector<1x1x8x64xf32>
    %46 = vector.shape_cast %45 : vector<1x1x8x64xf32> to vector<8x64xf32>
    %c0_26 = arith.constant 0 : index
    %c0_27 = arith.constant 0 : index
    %47 = vector.load %arg6[%c0_26, %c0_27] : memref<8x16xf32, #tpu.memory_space<vmem>>, vector<8x16xf32>
    %c0_28 = arith.constant 0 : index
    %c0_29 = arith.constant 0 : index
    %c0_30 = arith.constant 0 : index
    %48 = vector.load %arg3[%c0_28, %c0_29, %c0_30] : memref<1x16x64xf32, #tpu.memory_space<vmem>>, vector<1x16x64xf32>
    %49 = vector.shape_cast %48 : vector<1x16x64xf32> to vector<16x64xf32>
    %cst_31 = arith.constant dense<0.000000e+00> : vector<8x64xf32>
    %50 = tpu.matmul %47, %49, %cst_31 {dimension_numbers = #tpu.dot_dimension_numbers<[1], [0], [0], [1], [0, 0, 1, 1], [], []>} : vector<8x16xf32>, vector<16x64xf32>, vector<8x64xf32> -> vector<8x64xf32>
    %51 = arith.addf %46, %50 : vector<8x64xf32>
    %52 = vector.extract_strided_slice %51 {offsets = [0, 0], sizes = [8, 48], strides = [1, 1]} : vector<8x64xf32> to vector<8x48xf32>
    %53 = arith.negf %52 : vector<8x48xf32>
    %54 = math.exp %53 : vector<8x48xf32>
    %cst_32 = arith.constant 1.000000e+00 : f32
    %55 = vector.broadcast %cst_32 : f32 to vector<8x48xf32>
    %56 = arith.addf %55, %54 : vector<8x48xf32>
    %57 = arith.divf %55, %56 : vector<8x48xf32>
    %58 = vector.extract_strided_slice %51 {offsets = [0, 48], sizes = [8, 16], strides = [1, 1]} : vector<8x64xf32> to vector<8x16xf32>
    %59 = math.tanh %58 : vector<8x16xf32>
    %60 = vector.extract_strided_slice %57 {offsets = [0, 0], sizes = [8, 16], strides = [1, 1]} : vector<8x48xf32> to vector<8x16xf32>
    %61 = vector.extract_strided_slice %57 {offsets = [0, 16], sizes = [8, 16], strides = [1, 1]} : vector<8x48xf32> to vector<8x16xf32>
    %62 = vector.extract_strided_slice %57 {offsets = [0, 32], sizes = [8, 16], strides = [1, 1]} : vector<8x48xf32> to vector<8x16xf32>
    %c0_33 = arith.constant 0 : index
    %c0_34 = arith.constant 0 : index
    %63 = vector.load %arg7[%c0_33, %c0_34] : memref<8x16xf32, #tpu.memory_space<vmem>>, vector<8x16xf32>
    %64 = arith.mulf %61, %63 : vector<8x16xf32>
    %65 = arith.mulf %60, %59 : vector<8x16xf32>
    %66 = arith.addf %64, %65 : vector<8x16xf32>
    %67 = math.tanh %66 : vector<8x16xf32>
    %68 = arith.mulf %62, %67 : vector<8x16xf32>
    %c0_35 = arith.constant 0 : index
    %c0_36 = arith.constant 0 : index
    %69 = vector.load %arg6[%c0_35, %c0_36] : memref<8x16xf32, #tpu.memory_space<vmem>>, vector<8x16xf32>
    tpu.vector_store %arg6[%c0_35, %c0_36], %68 {strides = array<i32>} : memref<8x16xf32, #tpu.memory_space<vmem>>, vector<8x16xf32>,
    %c0_37 = arith.constant 0 : index
    %c0_38 = arith.constant 0 : index
    %70 = vector.load %arg7[%c0_37, %c0_38] : memref<8x16xf32, #tpu.memory_space<vmem>>, vector<8x16xf32>
    tpu.vector_store %arg7[%c0_37, %c0_38], %66 {strides = array<i32>} : memref<8x16xf32, #tpu.memory_space<vmem>>, vector<8x16xf32>,
    %c0_39 = arith.constant 0 : index
    %71 = arith.index_cast %43 : i32 to index
    %c0_40 = arith.constant 0 : index
    %c0_41 = arith.constant 0 : index
    %72 = vector.load %arg4[%c0_39, %71, %c0_40, %c0_41] : memref<1x8x8x16xf32, #tpu.memory_space<vmem>>, vector<1x1x8x16xf32>
    %73 = vector.shape_cast %72 : vector<1x1x8x16xf32> to vector<8x16xf32>
    %74 = vector.shape_cast %68 : vector<8x16xf32> to vector<1x1x8x16xf32>
    tpu.vector_store %arg4[%c0_39, %71, %c0_40, %c0_41], %74 {strides = array<i32>} : memref<1x8x8x16xf32, #tpu.memory_space<vmem>>, vector<1x1x8x16xf32>,
    %c2_i32_42 = arith.constant 2 : i32
    %c2_i32_43 = arith.constant 2 : i32
    %75 = arith.muli %c2_i32_43, %arg0 : i32
    %c1_i32_44 = arith.constant 1 : i32
    %76 = arith.subi %c1_i32_44, %75 : i32
    %77 = arith.muli %c2_i32_42, %76 : i32
    %c7_i32_45 = arith.constant 7 : i32
    %78 = arith.muli %arg0, %c7_i32_45 : i32
    %79 = arith.addi %77, %78 : i32
    %c0_46 = arith.constant 0 : index
    %80 = arith.index_cast %79 : i32 to index
    %c0_47 = arith.constant 0 : index
    %c0_48 = arith.constant 0 : index
    %81 = vector.load %arg2[%c0_46, %80, %c0_47, %c0_48] : memref<1x8x8x64xf32, #tpu.memory_space<vmem>>, vector<1x1x8x64xf32>
    %82 = vector.shape_cast %81 : vector<1x1x8x64xf32> to vector<8x64xf32>
    %c0_49 = arith.constant 0 : index
    %c0_50 = arith.constant 0 : index
    %83 = vector.load %arg6[%c0_49, %c0_50] : memref<8x16xf32, #tpu.memory_space<vmem>>, vector<8x16xf32>
    %c0_51 = arith.constant 0 : index
    %c0_52 = arith.constant 0 : index
    %c0_53 = arith.constant 0 : index
    %84 = vector.load %arg3[%c0_51, %c0_52, %c0_53] : memref<1x16x64xf32, #tpu.memory_space<vmem>>, vector<1x16x64xf32>
    %85 = vector.shape_cast %84 : vector<1x16x64xf32> to vector<16x64xf32>
    %cst_54 = arith.constant dense<0.000000e+00> : vector<8x64xf32>
    %86 = tpu.matmul %83, %85, %cst_54 {dimension_numbers = #tpu.dot_dimension_numbers<[1], [0], [0], [1], [0, 0, 1, 1], [], []>} : vector<8x16xf32>, vector<16x64xf32>, vector<8x64xf32> -> vector<8x64xf32>
    %87 = arith.addf %82, %86 : vector<8x64xf32>
    %88 = vector.extract_strided_slice %87 {offsets = [0, 0], sizes = [8, 48], strides = [1, 1]} : vector<8x64xf32> to vector<8x48xf32>
    %89 = arith.negf %88 : vector<8x48xf32>
    %90 = math.exp %89 : vector<8x48xf32>
    %cst_55 = arith.constant 1.000000e+00 : f32
    %91 = vector.broadcast %cst_55 : f32 to vector<8x48xf32>
    %92 = arith.addf %91, %90 : vector<8x48xf32>
    %93 = arith.divf %91, %92 : vector<8x48xf32>
    %94 = vector.extract_strided_slice %87 {offsets = [0, 48], sizes = [8, 16], strides = [1, 1]} : vector<8x64xf32> to vector<8x16xf32>
    %95 = math.tanh %94 : vector<8x16xf32>
    %96 = vector.extract_strided_slice %93 {offsets = [0, 0], sizes = [8, 16], strides = [1, 1]} : vector<8x48xf32> to vector<8x16xf32>
    %97 = vector.extract_strided_slice %93 {offsets = [0, 16], sizes = [8, 16], strides = [1, 1]} : vector<8x48xf32> to vector<8x16xf32>
    %98 = vector.extract_strided_slice %93 {offsets = [0, 32], sizes = [8, 16], strides = [1, 1]} : vector<8x48xf32> to vector<8x16xf32>
    %c0_56 = arith.constant 0 : index
    %c0_57 = arith.constant 0 : index
    %99 = vector.load %arg7[%c0_56, %c0_57] : memref<8x16xf32, #tpu.memory_space<vmem>>, vector<8x16xf32>
    %100 = arith.mulf %97, %99 : vector<8x16xf32>
    %101 = arith.mulf %96, %95 : vector<8x16xf32>
    %102 = arith.addf %100, %101 : vector<8x16xf32>
    %103 = math.tanh %102 : vector<8x16xf32>
    %104 = arith.mulf %98, %103 : vector<8x16xf32>
    %c0_58 = arith.constant 0 : index
    %c0_59 = arith.constant 0 : index
    %105 = vector.load %arg6[%c0_58, %c0_59] : memref<8x16xf32, #tpu.memory_space<vmem>>, vector<8x16xf32>
    tpu.vector_store %arg6[%c0_58, %c0_59], %104 {strides = array<i32>} : memref<8x16xf32, #tpu.memory_space<vmem>>, vector<8x16xf32>,
    %c0_60 = arith.constant 0 : index
    %c0_61 = arith.constant 0 : index
    %106 = vector.load %arg7[%c0_60, %c0_61] : memref<8x16xf32, #tpu.memory_space<vmem>>, vector<8x16xf32>
    tpu.vector_store %arg7[%c0_60, %c0_61], %102 {strides = array<i32>} : memref<8x16xf32, #tpu.memory_space<vmem>>, vector<8x16xf32>,
    %c0_62 = arith.constant 0 : index
    %107 = arith.index_cast %79 : i32 to index
    %c0_63 = arith.constant 0 : index
    %c0_64 = arith.constant 0 : index
    %108 = vector.load %arg4[%c0_62, %107, %c0_63, %c0_64] : memref<1x8x8x16xf32, #tpu.memory_space<vmem>>, vector<1x1x8x16xf32>
    %109 = vector.shape_cast %108 : vector<1x1x8x16xf32> to vector<8x16xf32>
    %110 = vector.shape_cast %104 : vector<8x16xf32> to vector<1x1x8x16xf32>
    tpu.vector_store %arg4[%c0_62, %107, %c0_63, %c0_64], %110 {strides = array<i32>} : memref<1x8x8x16xf32, #tpu.memory_space<vmem>>, vector<1x1x8x16xf32>,
    %c3_i32 = arith.constant 3 : i32
    %c2_i32_65 = arith.constant 2 : i32
    %111 = arith.muli %c2_i32_65, %arg0 : i32
    %c1_i32_66 = arith.constant 1 : i32
    %112 = arith.subi %c1_i32_66, %111 : i32
    %113 = arith.muli %c3_i32, %112 : i32
    %c7_i32_67 = arith.constant 7 : i32
    %114 = arith.muli %arg0, %c7_i32_67 : i32
    %115 = arith.addi %113, %114 : i32
    %c0_68 = arith.constant 0 : index
    %116 = arith.index_cast %115 : i32 to index
    %c0_69 = arith.constant 0 : index
    %c0_70 = arith.constant 0 : index
    %117 = vector.load %arg2[%c0_68, %116, %c0_69, %c0_70] : memref<1x8x8x64xf32, #tpu.memory_space<vmem>>, vector<1x1x8x64xf32>
    %118 = vector.shape_cast %117 : vector<1x1x8x64xf32> to vector<8x64xf32>
    %c0_71 = arith.constant 0 : index
    %c0_72 = arith.constant 0 : index
    %119 = vector.load %arg6[%c0_71, %c0_72] : memref<8x16xf32, #tpu.memory_space<vmem>>, vector<8x16xf32>
    %c0_73 = arith.constant 0 : index
    %c0_74 = arith.constant 0 : index
    %c0_75 = arith.constant 0 : index
    %120 = vector.load %arg3[%c0_73, %c0_74, %c0_75] : memref<1x16x64xf32, #tpu.memory_space<vmem>>, vector<1x16x64xf32>
    %121 = vector.shape_cast %120 : vector<1x16x64xf32> to vector<16x64xf32>
    %cst_76 = arith.constant dense<0.000000e+00> : vector<8x64xf32>
    %122 = tpu.matmul %119, %121, %cst_76 {dimension_numbers = #tpu.dot_dimension_numbers<[1], [0], [0], [1], [0, 0, 1, 1], [], []>} : vector<8x16xf32>, vector<16x64xf32>, vector<8x64xf32> -> vector<8x64xf32>
    %123 = arith.addf %118, %122 : vector<8x64xf32>
    %124 = vector.extract_strided_slice %123 {offsets = [0, 0], sizes = [8, 48], strides = [1, 1]} : vector<8x64xf32> to vector<8x48xf32>
    %125 = arith.negf %124 : vector<8x48xf32>
    %126 = math.exp %125 : vector<8x48xf32>
    %cst_77 = arith.constant 1.000000e+00 : f32
    %127 = vector.broadcast %cst_77 : f32 to vector<8x48xf32>
    %128 = arith.addf %127, %126 : vector<8x48xf32>
    %129 = arith.divf %127, %128 : vector<8x48xf32>
    %130 = vector.extract_strided_slice %123 {offsets = [0, 48], sizes = [8, 16], strides = [1, 1]} : vector<8x64xf32> to vector<8x16xf32>
    %131 = math.tanh %130 : vector<8x16xf32>
    %132 = vector.extract_strided_slice %129 {offsets = [0, 0], sizes = [8, 16], strides = [1, 1]} : vector<8x48xf32> to vector<8x16xf32>
    %133 = vector.extract_strided_slice %129 {offsets = [0, 16], sizes = [8, 16], strides = [1, 1]} : vector<8x48xf32> to vector<8x16xf32>
    %134 = vector.extract_strided_slice %129 {offsets = [0, 32], sizes = [8, 16], strides = [1, 1]} : vector<8x48xf32> to vector<8x16xf32>
    %c0_78 = arith.constant 0 : index
    %c0_79 = arith.constant 0 : index
    %135 = vector.load %arg7[%c0_78, %c0_79] : memref<8x16xf32, #tpu.memory_space<vmem>>, vector<8x16xf32>
    %136 = arith.mulf %133, %135 : vector<8x16xf32>
    %137 = arith.mulf %132, %131 : vector<8x16xf32>
    %138 = arith.addf %136, %137 : vector<8x16xf32>
    %139 = math.tanh %138 : vector<8x16xf32>
    %140 = arith.mulf %134, %139 : vector<8x16xf32>
    %c0_80 = arith.constant 0 : index
    %c0_81 = arith.constant 0 : index
    %141 = vector.load %arg6[%c0_80, %c0_81] : memref<8x16xf32, #tpu.memory_space<vmem>>, vector<8x16xf32>
    tpu.vector_store %arg6[%c0_80, %c0_81], %140 {strides = array<i32>} : memref<8x16xf32, #tpu.memory_space<vmem>>, vector<8x16xf32>,
    %c0_82 = arith.constant 0 : index
    %c0_83 = arith.constant 0 : index
    %142 = vector.load %arg7[%c0_82, %c0_83] : memref<8x16xf32, #tpu.memory_space<vmem>>, vector<8x16xf32>
    tpu.vector_store %arg7[%c0_82, %c0_83], %138 {strides = array<i32>} : memref<8x16xf32, #tpu.memory_space<vmem>>, vector<8x16xf32>,
    %c0_84 = arith.constant 0 : index
    %143 = arith.index_cast %115 : i32 to index
    %c0_85 = arith.constant 0 : index
    %c0_86 = arith.constant 0 : index
    %144 = vector.load %arg4[%c0_84, %143, %c0_85, %c0_86] : memref<1x8x8x16xf32, #tpu.memory_space<vmem>>, vector<1x1x8x16xf32>
    %145 = vector.shape_cast %144 : vector<1x1x8x16xf32> to vector<8x16xf32>
    %146 = vector.shape_cast %140 : vector<8x16xf32> to vector<1x1x8x16xf32>
    tpu.vector_store %arg4[%c0_84, %143, %c0_85, %c0_86], %146 {strides = array<i32>} : memref<1x8x8x16xf32, #tpu.memory_space<vmem>>, vector<1x1x8x16xf32>,
    %c4_i32 = arith.constant 4 : i32
    %c2_i32_87 = arith.constant 2 : i32
    %147 = arith.muli %c2_i32_87, %arg0 : i32
    %c1_i32_88 = arith.constant 1 : i32
    %148 = arith.subi %c1_i32_88, %147 : i32
    %149 = arith.muli %c4_i32, %148 : i32
    %c7_i32_89 = arith.constant 7 : i32
    %150 = arith.muli %arg0, %c7_i32_89 : i32
    %151 = arith.addi %149, %150 : i32
    %c0_90 = arith.constant 0 : index
    %152 = arith.index_cast %151 : i32 to index
    %c0_91 = arith.constant 0 : index
    %c0_92 = arith.constant 0 : index
    %153 = vector.load %arg2[%c0_90, %152, %c0_91, %c0_92] : memref<1x8x8x64xf32, #tpu.memory_space<vmem>>, vector<1x1x8x64xf32>
    %154 = vector.shape_cast %153 : vector<1x1x8x64xf32> to vector<8x64xf32>
    %c0_93 = arith.constant 0 : index
    %c0_94 = arith.constant 0 : index
    %155 = vector.load %arg6[%c0_93, %c0_94] : memref<8x16xf32, #tpu.memory_space<vmem>>, vector<8x16xf32>
    %c0_95 = arith.constant 0 : index
    %c0_96 = arith.constant 0 : index
    %c0_97 = arith.constant 0 : index
    %156 = vector.load %arg3[%c0_95, %c0_96, %c0_97] : memref<1x16x64xf32, #tpu.memory_space<vmem>>, vector<1x16x64xf32>
    %157 = vector.shape_cast %156 : vector<1x16x64xf32> to vector<16x64xf32>
    %cst_98 = arith.constant dense<0.000000e+00> : vector<8x64xf32>
    %158 = tpu.matmul %155, %157, %cst_98 {dimension_numbers = #tpu.dot_dimension_numbers<[1], [0], [0], [1], [0, 0, 1, 1], [], []>} : vector<8x16xf32>, vector<16x64xf32>, vector<8x64xf32> -> vector<8x64xf32>
    %159 = arith.addf %154, %158 : vector<8x64xf32>
    %160 = vector.extract_strided_slice %159 {offsets = [0, 0], sizes = [8, 48], strides = [1, 1]} : vector<8x64xf32> to vector<8x48xf32>
    %161 = arith.negf %160 : vector<8x48xf32>
    %162 = math.exp %161 : vector<8x48xf32>
    %cst_99 = arith.constant 1.000000e+00 : f32
    %163 = vector.broadcast %cst_99 : f32 to vector<8x48xf32>
    %164 = arith.addf %163, %162 : vector<8x48xf32>
    %165 = arith.divf %163, %164 : vector<8x48xf32>
    %166 = vector.extract_strided_slice %159 {offsets = [0, 48], sizes = [8, 16], strides = [1, 1]} : vector<8x64xf32> to vector<8x16xf32>
    %167 = math.tanh %166 : vector<8x16xf32>
    %168 = vector.extract_strided_slice %165 {offsets = [0, 0], sizes = [8, 16], strides = [1, 1]} : vector<8x48xf32> to vector<8x16xf32>
    %169 = vector.extract_strided_slice %165 {offsets = [0, 16], sizes = [8, 16], strides = [1, 1]} : vector<8x48xf32> to vector<8x16xf32>
    %170 = vector.extract_strided_slice %165 {offsets = [0, 32], sizes = [8, 16], strides = [1, 1]} : vector<8x48xf32> to vector<8x16xf32>
    %c0_100 = arith.constant 0 : index
    %c0_101 = arith.constant 0 : index
    %171 = vector.load %arg7[%c0_100, %c0_101] : memref<8x16xf32, #tpu.memory_space<vmem>>, vector<8x16xf32>
    %172 = arith.mulf %169, %171 : vector<8x16xf32>
    %173 = arith.mulf %168, %167 : vector<8x16xf32>
    %174 = arith.addf %172, %173 : vector<8x16xf32>
    %175 = math.tanh %174 : vector<8x16xf32>
    %176 = arith.mulf %170, %175 : vector<8x16xf32>
    %c0_102 = arith.constant 0 : index
    %c0_103 = arith.constant 0 : index
    %177 = vector.load %arg6[%c0_102, %c0_103] : memref<8x16xf32, #tpu.memory_space<vmem>>, vector<8x16xf32>
    tpu.vector_store %arg6[%c0_102, %c0_103], %176 {strides = array<i32>} : memref<8x16xf32, #tpu.memory_space<vmem>>, vector<8x16xf32>,
    %c0_104 = arith.constant 0 : index
    %c0_105 = arith.constant 0 : index
    %178 = vector.load %arg7[%c0_104, %c0_105] : memref<8x16xf32, #tpu.memory_space<vmem>>, vector<8x16xf32>
    tpu.vector_store %arg7[%c0_104, %c0_105], %174 {strides = array<i32>} : memref<8x16xf32, #tpu.memory_space<vmem>>, vector<8x16xf32>,
    %c0_106 = arith.constant 0 : index
    %179 = arith.index_cast %151 : i32 to index
    %c0_107 = arith.constant 0 : index
    %c0_108 = arith.constant 0 : index
    %180 = vector.load %arg4[%c0_106, %179, %c0_107, %c0_108] : memref<1x8x8x16xf32, #tpu.memory_space<vmem>>, vector<1x1x8x16xf32>
    %181 = vector.shape_cast %180 : vector<1x1x8x16xf32> to vector<8x16xf32>
    %182 = vector.shape_cast %176 : vector<8x16xf32> to vector<1x1x8x16xf32>
    tpu.vector_store %arg4[%c0_106, %179, %c0_107, %c0_108], %182 {strides = array<i32>} : memref<1x8x8x16xf32, #tpu.memory_space<vmem>>, vector<1x1x8x16xf32>,
    %c5_i32 = arith.constant 5 : i32
    %c2_i32_109 = arith.constant 2 : i32
    %183 = arith.muli %c2_i32_109, %arg0 : i32
    %c1_i32_110 = arith.constant 1 : i32
    %184 = arith.subi %c1_i32_110, %183 : i32
    %185 = arith.muli %c5_i32, %184 : i32
    %c7_i32_111 = arith.constant 7 : i32
    %186 = arith.muli %arg0, %c7_i32_111 : i32
    %187 = arith.addi %185, %186 : i32
    %c0_112 = arith.constant 0 : index
    %188 = arith.index_cast %187 : i32 to index
    %c0_113 = arith.constant 0 : index
    %c0_114 = arith.constant 0 : index
    %189 = vector.load %arg2[%c0_112, %188, %c0_113, %c0_114] : memref<1x8x8x64xf32, #tpu.memory_space<vmem>>, vector<1x1x8x64xf32>
    %190 = vector.shape_cast %189 : vector<1x1x8x64xf32> to vector<8x64xf32>
    %c0_115 = arith.constant 0 : index
    %c0_116 = arith.constant 0 : index
    %191 = vector.load %arg6[%c0_115, %c0_116] : memref<8x16xf32, #tpu.memory_space<vmem>>, vector<8x16xf32>
    %c0_117 = arith.constant 0 : index
    %c0_118 = arith.constant 0 : index
    %c0_119 = arith.constant 0 : index
    %192 = vector.load %arg3[%c0_117, %c0_118, %c0_119] : memref<1x16x64xf32, #tpu.memory_space<vmem>>, vector<1x16x64xf32>
    %193 = vector.shape_cast %192 : vector<1x16x64xf32> to vector<16x64xf32>
    %cst_120 = arith.constant dense<0.000000e+00> : vector<8x64xf32>
    %194 = tpu.matmul %191, %193, %cst_120 {dimension_numbers = #tpu.dot_dimension_numbers<[1], [0], [0], [1], [0, 0, 1, 1], [], []>} : vector<8x16xf32>, vector<16x64xf32>, vector<8x64xf32> -> vector<8x64xf32>
    %195 = arith.addf %190, %194 : vector<8x64xf32>
    %196 = vector.extract_strided_slice %195 {offsets = [0, 0], sizes = [8, 48], strides = [1, 1]} : vector<8x64xf32> to vector<8x48xf32>
    %197 = arith.negf %196 : vector<8x48xf32>
    %198 = math.exp %197 : vector<8x48xf32>
    %cst_121 = arith.constant 1.000000e+00 : f32
    %199 = vector.broadcast %cst_121 : f32 to vector<8x48xf32>
    %200 = arith.addf %199, %198 : vector<8x48xf32>
    %201 = arith.divf %199, %200 : vector<8x48xf32>
    %202 = vector.extract_strided_slice %195 {offsets = [0, 48], sizes = [8, 16], strides = [1, 1]} : vector<8x64xf32> to vector<8x16xf32>
    %203 = math.tanh %202 : vector<8x16xf32>
    %204 = vector.extract_strided_slice %201 {offsets = [0, 0], sizes = [8, 16], strides = [1, 1]} : vector<8x48xf32> to vector<8x16xf32>
    %205 = vector.extract_strided_slice %201 {offsets = [0, 16], sizes = [8, 16], strides = [1, 1]} : vector<8x48xf32> to vector<8x16xf32>
    %206 = vector.extract_strided_slice %201 {offsets = [0, 32], sizes = [8, 16], strides = [1, 1]} : vector<8x48xf32> to vector<8x16xf32>
    %c0_122 = arith.constant 0 : index
    %c0_123 = arith.constant 0 : index
    %207 = vector.load %arg7[%c0_122, %c0_123] : memref<8x16xf32, #tpu.memory_space<vmem>>, vector<8x16xf32>
    %208 = arith.mulf %205, %207 : vector<8x16xf32>
    %209 = arith.mulf %204, %203 : vector<8x16xf32>
    %210 = arith.addf %208, %209 : vector<8x16xf32>
    %211 = math.tanh %210 : vector<8x16xf32>
    %212 = arith.mulf %206, %211 : vector<8x16xf32>
    %c0_124 = arith.constant 0 : index
    %c0_125 = arith.constant 0 : index
    %213 = vector.load %arg6[%c0_124, %c0_125] : memref<8x16xf32, #tpu.memory_space<vmem>>, vector<8x16xf32>
    tpu.vector_store %arg6[%c0_124, %c0_125], %212 {strides = array<i32>} : memref<8x16xf32, #tpu.memory_space<vmem>>, vector<8x16xf32>,
    %c0_126 = arith.constant 0 : index
    %c0_127 = arith.constant 0 : index
    %214 = vector.load %arg7[%c0_126, %c0_127] : memref<8x16xf32, #tpu.memory_space<vmem>>, vector<8x16xf32>
    tpu.vector_store %arg7[%c0_126, %c0_127], %210 {strides = array<i32>} : memref<8x16xf32, #tpu.memory_space<vmem>>, vector<8x16xf32>,
    %c0_128 = arith.constant 0 : index
    %215 = arith.index_cast %187 : i32 to index
    %c0_129 = arith.constant 0 : index
    %c0_130 = arith.constant 0 : index
    %216 = vector.load %arg4[%c0_128, %215, %c0_129, %c0_130] : memref<1x8x8x16xf32, #tpu.memory_space<vmem>>, vector<1x1x8x16xf32>
    %217 = vector.shape_cast %216 : vector<1x1x8x16xf32> to vector<8x16xf32>
    %218 = vector.shape_cast %212 : vector<8x16xf32> to vector<1x1x8x16xf32>
    tpu.vector_store %arg4[%c0_128, %215, %c0_129, %c0_130], %218 {strides = array<i32>} : memref<1x8x8x16xf32, #tpu.memory_space<vmem>>, vector<1x1x8x16xf32>,
    %c6_i32 = arith.constant 6 : i32
    %c2_i32_131 = arith.constant 2 : i32
    %219 = arith.muli %c2_i32_131, %arg0 : i32
    %c1_i32_132 = arith.constant 1 : i32
    %220 = arith.subi %c1_i32_132, %219 : i32
    %221 = arith.muli %c6_i32, %220 : i32
    %c7_i32_133 = arith.constant 7 : i32
    %222 = arith.muli %arg0, %c7_i32_133 : i32
    %223 = arith.addi %221, %222 : i32
    %c0_134 = arith.constant 0 : index
    %224 = arith.index_cast %223 : i32 to index
    %c0_135 = arith.constant 0 : index
    %c0_136 = arith.constant 0 : index
    %225 = vector.load %arg2[%c0_134, %224, %c0_135, %c0_136] : memref<1x8x8x64xf32, #tpu.memory_space<vmem>>, vector<1x1x8x64xf32>
    %226 = vector.shape_cast %225 : vector<1x1x8x64xf32> to vector<8x64xf32>
    %c0_137 = arith.constant 0 : index
    %c0_138 = arith.constant 0 : index
    %227 = vector.load %arg6[%c0_137, %c0_138] : memref<8x16xf32, #tpu.memory_space<vmem>>, vector<8x16xf32>
    %c0_139 = arith.constant 0 : index
    %c0_140 = arith.constant 0 : index
    %c0_141 = arith.constant 0 : index
    %228 = vector.load %arg3[%c0_139, %c0_140, %c0_141] : memref<1x16x64xf32, #tpu.memory_space<vmem>>, vector<1x16x64xf32>
    %229 = vector.shape_cast %228 : vector<1x16x64xf32> to vector<16x64xf32>
    %cst_142 = arith.constant dense<0.000000e+00> : vector<8x64xf32>
    %230 = tpu.matmul %227, %229, %cst_142 {dimension_numbers = #tpu.dot_dimension_numbers<[1], [0], [0], [1], [0, 0, 1, 1], [], []>} : vector<8x16xf32>, vector<16x64xf32>, vector<8x64xf32> -> vector<8x64xf32>
    %231 = arith.addf %226, %230 : vector<8x64xf32>
    %232 = vector.extract_strided_slice %231 {offsets = [0, 0], sizes = [8, 48], strides = [1, 1]} : vector<8x64xf32> to vector<8x48xf32>
    %233 = arith.negf %232 : vector<8x48xf32>
    %234 = math.exp %233 : vector<8x48xf32>
    %cst_143 = arith.constant 1.000000e+00 : f32
    %235 = vector.broadcast %cst_143 : f32 to vector<8x48xf32>
    %236 = arith.addf %235, %234 : vector<8x48xf32>
    %237 = arith.divf %235, %236 : vector<8x48xf32>
    %238 = vector.extract_strided_slice %231 {offsets = [0, 48], sizes = [8, 16], strides = [1, 1]} : vector<8x64xf32> to vector<8x16xf32>
    %239 = math.tanh %238 : vector<8x16xf32>
    %240 = vector.extract_strided_slice %237 {offsets = [0, 0], sizes = [8, 16], strides = [1, 1]} : vector<8x48xf32> to vector<8x16xf32>
    %241 = vector.extract_strided_slice %237 {offsets = [0, 16], sizes = [8, 16], strides = [1, 1]} : vector<8x48xf32> to vector<8x16xf32>
    %242 = vector.extract_strided_slice %237 {offsets = [0, 32], sizes = [8, 16], strides = [1, 1]} : vector<8x48xf32> to vector<8x16xf32>
    %c0_144 = arith.constant 0 : index
    %c0_145 = arith.constant 0 : index
    %243 = vector.load %arg7[%c0_144, %c0_145] : memref<8x16xf32, #tpu.memory_space<vmem>>, vector<8x16xf32>
    %244 = arith.mulf %241, %243 : vector<8x16xf32>
    %245 = arith.mulf %240, %239 : vector<8x16xf32>
    %246 = arith.addf %244, %245 : vector<8x16xf32>
    %247 = math.tanh %246 : vector<8x16xf32>
    %248 = arith.mulf %242, %247 : vector<8x16xf32>
    %c0_146 = arith.constant 0 : index
    %c0_147 = arith.constant 0 : index
    %249 = vector.load %arg6[%c0_146, %c0_147] : memref<8x16xf32, #tpu.memory_space<vmem>>, vector<8x16xf32>
    tpu.vector_store %arg6[%c0_146, %c0_147], %248 {strides = array<i32>} : memref<8x16xf32, #tpu.memory_space<vmem>>, vector<8x16xf32>,
    %c0_148 = arith.constant 0 : index
    %c0_149 = arith.constant 0 : index
    %250 = vector.load %arg7[%c0_148, %c0_149] : memref<8x16xf32, #tpu.memory_space<vmem>>, vector<8x16xf32>
    tpu.vector_store %arg7[%c0_148, %c0_149], %246 {strides = array<i32>} : memref<8x16xf32, #tpu.memory_space<vmem>>, vector<8x16xf32>,
    %c0_150 = arith.constant 0 : index
    %251 = arith.index_cast %223 : i32 to index
    %c0_151 = arith.constant 0 : index
    %c0_152 = arith.constant 0 : index
    %252 = vector.load %arg4[%c0_150, %251, %c0_151, %c0_152] : memref<1x8x8x16xf32, #tpu.memory_space<vmem>>, vector<1x1x8x16xf32>
    %253 = vector.shape_cast %252 : vector<1x1x8x16xf32> to vector<8x16xf32>
    %254 = vector.shape_cast %248 : vector<8x16xf32> to vector<1x1x8x16xf32>
    tpu.vector_store %arg4[%c0_150, %251, %c0_151, %c0_152], %254 {strides = array<i32>} : memref<1x8x8x16xf32, #tpu.memory_space<vmem>>, vector<1x1x8x16xf32>,
    %c7_i32_153 = arith.constant 7 : i32
    %c2_i32_154 = arith.constant 2 : i32
    %255 = arith.muli %c2_i32_154, %arg0 : i32
    %c1_i32_155 = arith.constant 1 : i32
    %256 = arith.subi %c1_i32_155, %255 : i32
    %257 = arith.muli %c7_i32_153, %256 : i32
    %c7_i32_156 = arith.constant 7 : i32
    %258 = arith.muli %arg0, %c7_i32_156 : i32
    %259 = arith.addi %257, %258 : i32
    %c0_157 = arith.constant 0 : index
    %260 = arith.index_cast %259 : i32 to index
    %c0_158 = arith.constant 0 : index
    %c0_159 = arith.constant 0 : index
    %261 = vector.load %arg2[%c0_157, %260, %c0_158, %c0_159] : memref<1x8x8x64xf32, #tpu.memory_space<vmem>>, vector<1x1x8x64xf32>
    %262 = vector.shape_cast %261 : vector<1x1x8x64xf32> to vector<8x64xf32>
    %c0_160 = arith.constant 0 : index
    %c0_161 = arith.constant 0 : index
    %263 = vector.load %arg6[%c0_160, %c0_161] : memref<8x16xf32, #tpu.memory_space<vmem>>, vector<8x16xf32>
    %c0_162 = arith.constant 0 : index
    %c0_163 = arith.constant 0 : index
    %c0_164 = arith.constant 0 : index
    %264 = vector.load %arg3[%c0_162, %c0_163, %c0_164] : memref<1x16x64xf32, #tpu.memory_space<vmem>>, vector<1x16x64xf32>
    %265 = vector.shape_cast %264 : vector<1x16x64xf32> to vector<16x64xf32>
    %cst_165 = arith.constant dense<0.000000e+00> : vector<8x64xf32>
    %266 = tpu.matmul %263, %265, %cst_165 {dimension_numbers = #tpu.dot_dimension_numbers<[1], [0], [0], [1], [0, 0, 1, 1], [], []>} : vector<8x16xf32>, vector<16x64xf32>, vector<8x64xf32> -> vector<8x64xf32>
    %267 = arith.addf %262, %266 : vector<8x64xf32>
    %268 = vector.extract_strided_slice %267 {offsets = [0, 0], sizes = [8, 48], strides = [1, 1]} : vector<8x64xf32> to vector<8x48xf32>
    %269 = arith.negf %268 : vector<8x48xf32>
    %270 = math.exp %269 : vector<8x48xf32>
    %cst_166 = arith.constant 1.000000e+00 : f32
    %271 = vector.broadcast %cst_166 : f32 to vector<8x48xf32>
    %272 = arith.addf %271, %270 : vector<8x48xf32>
    %273 = arith.divf %271, %272 : vector<8x48xf32>
    %274 = vector.extract_strided_slice %267 {offsets = [0, 48], sizes = [8, 16], strides = [1, 1]} : vector<8x64xf32> to vector<8x16xf32>
    %275 = math.tanh %274 : vector<8x16xf32>
    %276 = vector.extract_strided_slice %273 {offsets = [0, 0], sizes = [8, 16], strides = [1, 1]} : vector<8x48xf32> to vector<8x16xf32>
    %277 = vector.extract_strided_slice %273 {offsets = [0, 16], sizes = [8, 16], strides = [1, 1]} : vector<8x48xf32> to vector<8x16xf32>
    %278 = vector.extract_strided_slice %273 {offsets = [0, 32], sizes = [8, 16], strides = [1, 1]} : vector<8x48xf32> to vector<8x16xf32>
    %c0_167 = arith.constant 0 : index
    %c0_168 = arith.constant 0 : index
    %279 = vector.load %arg7[%c0_167, %c0_168] : memref<8x16xf32, #tpu.memory_space<vmem>>, vector<8x16xf32>
    %280 = arith.mulf %277, %279 : vector<8x16xf32>
    %281 = arith.mulf %276, %275 : vector<8x16xf32>
    %282 = arith.addf %280, %281 : vector<8x16xf32>
    %283 = math.tanh %282 : vector<8x16xf32>
    %284 = arith.mulf %278, %283 : vector<8x16xf32>
    %c0_169 = arith.constant 0 : index
    %c0_170 = arith.constant 0 : index
    %285 = vector.load %arg6[%c0_169, %c0_170] : memref<8x16xf32, #tpu.memory_space<vmem>>, vector<8x16xf32>
    tpu.vector_store %arg6[%c0_169, %c0_170], %284 {strides = array<i32>} : memref<8x16xf32, #tpu.memory_space<vmem>>, vector<8x16xf32>,
    %c0_171 = arith.constant 0 : index
    %c0_172 = arith.constant 0 : index
    %286 = vector.load %arg7[%c0_171, %c0_172] : memref<8x16xf32, #tpu.memory_space<vmem>>, vector<8x16xf32>
    tpu.vector_store %arg7[%c0_171, %c0_172], %282 {strides = array<i32>} : memref<8x16xf32, #tpu.memory_space<vmem>>, vector<8x16xf32>,
    %c0_173 = arith.constant 0 : index
    %287 = arith.index_cast %259 : i32 to index
    %c0_174 = arith.constant 0 : index
    %c0_175 = arith.constant 0 : index
    %288 = vector.load %arg4[%c0_173, %287, %c0_174, %c0_175] : memref<1x8x8x16xf32, #tpu.memory_space<vmem>>, vector<1x1x8x16xf32>
    %289 = vector.shape_cast %288 : vector<1x1x8x16xf32> to vector<8x16xf32>
    %290 = vector.shape_cast %284 : vector<8x16xf32> to vector<1x1x8x16xf32>
    tpu.vector_store %arg4[%c0_173, %287, %c0_174, %c0_175], %290 {strides = array<i32>} : memref<1x8x8x16xf32, #tpu.memory_space<vmem>>, vector<1x1x8x16xf32>,
    %c8_i32 = arith.constant 8 : i32
    %c0_i32_176 = arith.constant 0 : i32
    %291 = arith.cmpi eq, %arg1, %c0_i32_176 : i32
    %292 = arith.extui %291 : i1 to i32
    %c0_i32_177 = arith.constant 0 : i32
    %293 = arith.cmpi ne, %292, %c0_i32_177 : i32
    scf.if %293 {
      %c0_178 = arith.constant 0 : index
      %c0_179 = arith.constant 0 : index
      %294 = vector.load %arg7[%c0_178, %c0_179] : memref<8x16xf32, #tpu.memory_space<vmem>>, vector<8x16xf32>
      %c0_180 = arith.constant 0 : index
      %c0_181 = arith.constant 0 : index
      %c0_182 = arith.constant 0 : index
      %295 = vector.load %arg5[%c0_180, %c0_181, %c0_182] : memref<1x8x16xf32, #tpu.memory_space<vmem>>, vector<1x8x16xf32>
      %296 = vector.shape_cast %295 : vector<1x8x16xf32> to vector<8x16xf32>
      %297 = vector.shape_cast %294 : vector<8x16xf32> to vector<1x8x16xf32>
      tpu.vector_store %arg5[%c0_180, %c0_181, %c0_182], %297 {strides = array<i32>} : memref<1x8x16xf32, #tpu.memory_space<vmem>>, vector<1x8x16xf32>,
    } else {
    }
    return
  }
  func.func @transform_0(%arg0: i32, %arg1: i32) -> (i32, i32, i32, i32) {
    %c2_i32 = arith.constant 2 : i32
    %0 = arith.muli %c2_i32, %arg0 : i32
    %c1_i32 = arith.constant 1 : i32
    %1 = arith.subi %c1_i32, %0 : i32
    %2 = arith.muli %arg1, %1 : i32
    %c0_i32 = arith.constant 0 : i32
    %3 = arith.muli %arg0, %c0_i32 : i32
    %4 = arith.addi %2, %3 : i32
    %c0_i32_0 = arith.constant 0 : i32
    %c0_i32_1 = arith.constant 0 : i32
    %c0_i32_2 = arith.constant 0 : i32
    return %arg0, %4, %c0_i32_0, %c0_i32_1 : i32, i32, i32, i32
  }
  func.func @transform_1(%arg0: i32, %arg1: i32) -> (i32, i32, i32) {
    %c0_i32 = arith.constant 0 : i32
    %c0_i32_0 = arith.constant 0 : i32
    %c0_i32_1 = arith.constant 0 : i32
    return %arg0, %c0_i32, %c0_i32_0 : i32, i32, i32
  }
  func.func @transform_2(%arg0: i32, %arg1: i32) -> (i32, i32, i32, i32) {
    %c2_i32 = arith.constant 2 : i32
    %0 = arith.muli %c2_i32, %arg0 : i32
    %c1_i32 = arith.constant 1 : i32
    %1 = arith.subi %c1_i32, %0 : i32
    %2 = arith.muli %arg1, %1 : i32
    %c0_i32 = arith.constant 0 : i32
    %3 = arith.muli %arg0, %c0_i32 : i32
    %4 = arith.addi %2, %3 : i32
    %c0_i32_0 = arith.constant 0 : i32
    %c0_i32_1 = arith.constant 0 : i32
    %c0_i32_2 = arith.constant 0 : i32
    return %arg0, %4, %c0_i32_0, %c0_i32_1 : i32, i32, i32, i32
  }
  func.func @transform_3(%arg0: i32, %arg1: i32) -> (i32, i32, i32) {
    %c0_i32 = arith.constant 0 : i32
    %c0_i32_0 = arith.constant 0 : i32
    %c0_i32_1 = arith.constant 0 : i32
    return %arg0, %c0_i32, %c0_i32_0 : i32, i32, i32
  }
}

</mosaic_0001>

<llo_original>
// kernel: tpu_custom_call.1
$region0: #{tpu_custom_call.1}
  #allocation0 [shape = 'u32[]', space=smem, size = 0x4, offset = 0x4, fixed_abs, tag = 'smem constant byte address 0x4 - core index']
  #allocation1 [shape = 'u32[144,128]{1,0:T(1,128)}', space=vmem, size = 0x12000, scoped, tag = 'internal scratch']
  #allocation2 [shape = 'f32[8,16]{1,0:T(8,128)}', space=vmem, size = 0x1000, scoped, tag = 'scratch operand']
  #allocation3 [shape = 'f32[8,16]{1,0:T(8,128)}', space=vmem, size = 0x1000, scoped, tag = 'scratch operand']
  %s0 = inlined_call_operand.hbm [shape: f32[2,8,8,64], index: 0, kind: input, shape index: {}]
  %s1 = inlined_call_operand.hbm [shape: f32[2,16,64], index: 1, kind: input, shape index: {}]
  %s2 = inlined_call_operand.hbm [shape: f32[2,8,8,16], index: 2, kind: output, shape index: {0}]
  %s3 = inlined_call_operand.hbm [shape: f32[2,8,16], index: 3, kind: output, shape index: {1}]
  %4 = xla_tuple %s2, %s3
  %s5 = sld [smem:[#allocation0]]
  $region65: #{tpu_custom_call.1} parent=0
    _
  %s7 = ssub.s32 1, %s5
  %s8 = scalar_select 0, %s7, %s5
  $region1: #{tpu_custom_call.1} parent=0
    #allocation4 [shape = 'u8[65536]{0}', space=vmem, size = 0x10000, scoped, tag = 'input window, operand 0']
    #allocation5 [shape = 's32[2]{0}', space=sflag, size = 0x8, scoped, tag = 'scoped memory for tpu_custom_call.1']
    #allocation6 [shape = 's32[2]{0}', space=sflag, size = 0x8, scoped, tag = 'scoped memory for tpu_custom_call.1']
    #allocation7 [shape = 'u8[16384]{0}', space=vmem, size = 0x4000, scoped, tag = 'input window, operand 1']
    #allocation8 [shape = 's32[2]{0}', space=sflag, size = 0x8, scoped, tag = 'scoped memory for tpu_custom_call.1']
    #allocation9 [shape = 'u8[65536]{0}', space=vmem, size = 0x10000, scoped, tag = 'output window, operand 0']
    #allocation10 [shape = 'u8[8192]{0}', space=vmem, size = 0x2000, scoped, tag = 'output window, operand 1']
    #allocation11 [shape = 's32[2]{0}', space=sflag, size = 0x8, scoped, tag = 'scoped memory for tpu_custom_call.1']
    %9 = vsyncpa [#allocation5], 0
    %s10 = scalar_lea.sflag [#allocation5], 1
    %11 = vsyncpa %s10, 0
    %12 = vsyncpa [#allocation8], 0
    %s13 = scalar_lea.sflag [#allocation8], 1
    %14 = vsyncpa %s13, 0
    %15 = vsyncpa [#allocation6], 0
    %s16 = scalar_lea.sflag [#allocation6], 1
    %17 = vsyncpa %s16, 0
    %18 = vsyncpa [#allocation11], 0
    %s19 = scalar_lea.sflag [#allocation11], 1
    %20 = vsyncpa %s19, 0
    loop: start=0, step=1, limit=4
    $region2: #{tpu_custom_call.1} parent=1 // loop_pre_header
      _
    $region3: #{tpu_custom_call.1} parent=1 // loop_header
      %s22 = sphi 0, %s26
      %p23 = scmp.ge.s32.totalorder %s22, 4
      %s29 = sphi 0, %s41
      %s30 = sphi 0, %s37
      %s31 = sphi 0, %s29
      %s32 = sphi 0, %s30
      %s33 = sphi 0, %s31
      %s34 = sphi 0, %s32
      %s52 = sphi 0, %s54
      %s55 = sphi 0, %s52
      %s56 = sphi 0, %s55
      %s72 = sphi 0, %s56
      %s78 = sphi 0, %s80
      %s81 = sphi 0, %s78
      %s82 = sphi 0, %s81
      %s98 = sphi 0, %s82
      %s112 = sphi 0, %s114
      %s115 = sphi 0, %s112
      %s116 = sphi 0, %s115
      %s132 = sphi 0, %s116
      %s138 = sphi 0, %s140
      %s141 = sphi 0, %s138
      %s142 = sphi 0, %s141
      %s158 = sphi 0, %s142
    $region4: #{tpu_custom_call.1} parent=1 // loop_header_branch
      %25 = sbr.rel (%p23) target = $region8
    $region5: #{tpu_custom_call.1} parent=1 // loop_body
      %s27 = ssub.s32 %s22, 1
      %s28 = ssub.s32 %s22, 2
      %s35 = sadd.s32 1, %s30
      %p36 = scmp.ge.s32.totalorder %s35, 1
      %s37 = scalar_select %p36, 0, %s35
      %s38 = sadd.s32 1, %s29
      %s39 = scalar_select %p36, %s38, %s29
      %p40 = scmp.ge.s32.totalorder %s39, 2
      %s41 = scalar_select %p40, 0, %s39
      %s42 = smul.u32 %s29, 2
      %s43 = ssub.s32 1, %s42
      %s44 = smul.u32 %s30, %s43
      %s45 = smul.u32 %s41, 2
      %s46 = ssub.s32 1, %s45
      %s47 = smul.u32 %s37, %s46
      %s48 = ssub.s32 %s29, %s41
      %s49 = ssub.s32 %s44, %s47
      %s50 = sor.u32 %s48, %s49
      %p51 = scmp.eq.s32.totalorder %s50, 0
      %s53 = sadd.s32 %s52, 1
      %s54 = scalar_select %p51, %s52, %s53
      %p57 = pneg %p51
      %p58 = scmp.eq.s32.totalorder %s22, 1
      %p59 = por %p57, %p58
      %p60 = scmp.ne.s32.totalorder %s52, %s55
      %p61 = scmp.eq.s32.totalorder %s22, 0
      %p62 = por %p60, %p61
      %p63 = scmp.ne.s32.totalorder %s52, %s55
      %p64 = scmp.eq.s32.totalorder %s27, 1
      %p65 = por %p63, %p64
      %p66 = scmp.ne.s32.totalorder %s55, %s56
      %p67 = scmp.eq.s32.totalorder %s27, 0
      %p68 = por %p66, %p67
      %p69 = scmp.ne.s32.totalorder %s55, %s56
      %p70 = scmp.eq.s32.totalorder %s28, 1
      %p71 = por %p69, %p70
      %p73 = scmp.ne.s32.totalorder %s56, %s72
      %p74 = scmp.eq.s32.totalorder %s28, 0
      %p75 = por %p73, %p74
      %s76 = ssub.s32 %s29, %s41
      %p77 = scmp.eq.s32.totalorder %s76, 0
      %s79 = sadd.s32 %s78, 1
      %s80 = scalar_select %p77, %s78, %s79
      %p83 = pneg %p77
      %p84 = scmp.eq.s32.totalorder %s22, 1
      %p85 = por %p83, %p84
      %p86 = scmp.ne.s32.totalorder %s78, %s81
      %p87 = scmp.eq.s32.totalorder %s22, 0
      %p88 = por %p86, %p87
      %p89 = scmp.ne.s32.totalorder %s78, %s81
      %p90 = scmp.eq.s32.totalorder %s27, 1
      %p91 = por %p89, %p90
      %p92 = scmp.ne.s32.totalorder %s81, %s82
      %p93 = scmp.eq.s32.totalorder %s27, 0
      %p94 = por %p92, %p93
      %p95 = scmp.ne.s32.totalorder %s81, %s82
      %p96 = scmp.eq.s32.totalorder %s28, 1
      %p97 = por %p95, %p96
      %p99 = scmp.ne.s32.totalorder %s82, %s98
      %p100 = scmp.eq.s32.totalorder %s28, 0
      %p101 = por %p99, %p100
      %s102 = smul.u32 %s29, 2
      %s103 = ssub.s32 1, %s102
      %s104 = smul.u32 %s30, %s103
      %s105 = smul.u32 %s41, 2
      %s106 = ssub.s32 1, %s105
      %s107 = smul.u32 %s37, %s106
      %s108 = ssub.s32 %s29, %s41
      %s109 = ssub.s32 %s104, %s107
      %s110 = sor.u32 %s108, %s109
      %p111 = scmp.eq.s32.totalorder %s110, 0
      %s113 = sadd.s32 %s112, 1
      %s114 = scalar_select %p111, %s112, %s113
      %p117 = pneg %p111
      %p118 = scmp.eq.s32.totalorder %s22, 1
      %p119 = por %p117, %p118
      %p120 = scmp.ne.s32.totalorder %s112, %s115
      %p121 = scmp.eq.s32.totalorder %s22, 0
      %p122 = por %p120, %p121
      %p123 = scmp.ne.s32.totalorder %s112, %s115
      %p124 = scmp.eq.s32.totalorder %s27, 1
      %p125 = por %p123, %p124
      %p126 = scmp.ne.s32.totalorder %s115, %s116
      %p127 = scmp.eq.s32.totalorder %s27, 0
      %p128 = por %p126, %p127
      %p129 = scmp.ne.s32.totalorder %s115, %s116
      %p130 = scmp.eq.s32.totalorder %s28, 1
      %p131 = por %p129, %p130
      %p133 = scmp.ne.s32.totalorder %s116, %s132
      %p134 = scmp.eq.s32.totalorder %s28, 0
      %p135 = por %p133, %p134
      %s136 = ssub.s32 %s29, %s41
      %p137 = scmp.eq.s32.totalorder %s136, 0
      %s139 = sadd.s32 %s138, 1
      %s140 = scalar_select %p137, %s138, %s139
      %p143 = pneg %p137
      %p144 = scmp.eq.s32.totalorder %s22, 1
      %p145 = por %p143, %p144
      %p146 = scmp.ne.s32.totalorder %s138, %s141
      %p147 = scmp.eq.s32.totalorder %s22, 0
      %p148 = por %p146, %p147
      %p149 = scmp.ne.s32.totalorder %s138, %s141
      %p150 = scmp.eq.s32.totalorder %s27, 1
      %p151 = por %p149, %p150
      %p152 = scmp.ne.s32.totalorder %s141, %s142
      %p153 = scmp.eq.s32.totalorder %s27, 0
      %p154 = por %p152, %p153
      %p155 = scmp.ne.s32.totalorder %s141, %s142
      %p156 = scmp.eq.s32.totalorder %s28, 1
      %p157 = por %p155, %p156
      %p159 = scmp.ne.s32.totalorder %s142, %s158
      %p160 = scmp.eq.s32.totalorder %s28, 0
      %p161 = por %p159, %p160
      %p162 = scmp.le.s32.totalorder 1, %s22
      %p163 = scmp.lt.s32.totalorder %s22, 3
      %p164 = pnand %p162, %p163
      %p165 = pneg %p164
      // Predicated region
      $region9: #{tpu_custom_call.1} parent=5 // pred_check
        _
      $region10: #{tpu_custom_call.1} parent=5 // pred_check_branch
        %167 = sbr.rel (%p164) target = $region12
      $region11: #{tpu_custom_call.1} parent=5 // pred_region
        %s168 = ssub.s32 %s22, 1
      $region12: #{tpu_custom_call.1} parent=5 // pred_fallthru
        _
      %p169 = scmp.lt.s32.totalorder %s22, 2
      // Predicated region
      $region13: #{tpu_custom_call.1} parent=5 // pred_check
        %p170 = pneg %p169
      $region14: #{tpu_custom_call.1} parent=5 // pred_check_branch
        %172 = sbr.rel (%p170) target = $region16
      $region15: #{tpu_custom_call.1} parent=5 // pred_region
        // Predicated region
        $region17: #{tpu_custom_call.1} parent=15 // pred_check
          %p173 = pneg %p62
        $region18: #{tpu_custom_call.1} parent=15 // pred_check_branch
          %175 = sbr.rel (%p173) target = $region20
        $region19: #{tpu_custom_call.1} parent=15 // pred_region
          %s176 = sand.u32 %s52, 1
          %s177 = scalar_lea.sflag [#allocation5], %s176
          %s178 = sand.u32 %s52, 1
          %s179 = smul.addr %s178, 64
          %s180 = scalar_lea.vmem [#allocation4], %s179
          %s181 = smul.u32 %s29, 2
          %s182 = ssub.s32 1, %s181
          %s183 = smul.u32 %s30, %s182
          %s184 = smul.u32 8, %s183
          %s186 = ssub.s32 1024, 1024
          %187 = vsyncadd %s177, %s186
          %s188 = smul.addr %s29, 8
          %s189 = sadd.s32 %s184, %s188
          %s190 = smul.addr %s189, 128
          %s191 = scalar_lea.hbm %s0, %s190
          %s192 = sshll.u32 %s180, 4
          %s193 = int_to_ptr.vmem [resolvable:$true] %s192
          %198 = dma.hbm_to_vmem [thread:$0]  %s191, 1024, %s193, %s177, 128, 128, 8
        $region20: #{tpu_custom_call.1} parent=15 // pred_fallthru
          _
        // Predicated region
        $region21: #{tpu_custom_call.1} parent=15 // pred_check
          %p199 = pneg %p88
        $region22: #{tpu_custom_call.1} parent=15 // pred_check_branch
          %201 = sbr.rel (%p199) target = $region24
        $region23: #{tpu_custom_call.1} parent=15 // pred_region
          %s202 = sand.u32 %s78, 1
          %s203 = scalar_lea.sflag [#allocation8], %s202
          %s204 = sand.u32 %s78, 1
          %s205 = smul.addr %s204, 16
          %s206 = scalar_lea.vmem [#allocation7], %s205
          %s208 = ssub.s32 256, 256
          %209 = vsyncadd %s203, %s208
          %s210 = smul.addr %s29, 2
          %s211 = smul.addr %s210, 128
          %s212 = scalar_lea.hbm %s1, %s211
          %s213 = sshll.u32 %s206, 4
          %s214 = int_to_ptr.vmem [resolvable:$true] %s213
          %219 = dma.hbm_to_vmem [thread:$0]  %s212, 256, %s214, %s203, 128, 128, 8
        $region24: #{tpu_custom_call.1} parent=15 // pred_fallthru
          _
      $region16: #{tpu_custom_call.1} parent=5 // pred_fallthru
        _
      %p220 = scmp.le.s32.totalorder 1, %s22
      %p221 = scmp.lt.s32.totalorder %s22, 3
      %p222 = pnand %p220, %p221
      %p223 = pneg %p222
      // Predicated region
      $region25: #{tpu_custom_call.1} parent=5 // pred_check
        _
      $region26: #{tpu_custom_call.1} parent=5 // pred_check_branch
        %225 = sbr.rel (%p222) target = $region28
      $region27: #{tpu_custom_call.1} parent=5 // pred_region
        %s226 = ssub.s32 %s22, 1
        %s227 = sand.u32 %s55, 1
        %s228 = scalar_lea.sflag [#allocation5], %s227
        %s229 = sand.u32 %s55, 1
        %s230 = smul.addr %s229, 64
        %s231 = scalar_lea.vmem [#allocation4], %s230
        // Predicated region
        $region29: #{tpu_custom_call.1} parent=27 // pred_check
          %p232 = pneg %p68
        $region30: #{tpu_custom_call.1} parent=27 // pred_check_branch
          %234 = sbr.rel (%p232) target = $region32
        $region31: #{tpu_custom_call.1} parent=27 // pred_region
          %235 = dma.done %s228, 1024
        $region32: #{tpu_custom_call.1} parent=27 // pred_fallthru
          _
        %s236 = sand.u32 %s81, 1
        %s237 = scalar_lea.sflag [#allocation8], %s236
        %s238 = sand.u32 %s81, 1
        %s239 = smul.addr %s238, 16
        %s240 = scalar_lea.vmem [#allocation7], %s239
        // Predicated region
        $region33: #{tpu_custom_call.1} parent=27 // pred_check
          %p241 = pneg %p94
        $region34: #{tpu_custom_call.1} parent=27 // pred_check_branch
          %243 = sbr.rel (%p241) target = $region36
        $region35: #{tpu_custom_call.1} parent=27 // pred_region
          %244 = dma.done %s237, 256
        $region36: #{tpu_custom_call.1} parent=27 // pred_fallthru
          _
        %s245 = sand.u32 %s55, 1
        %s246 = scalar_lea.sflag [#allocation5], %s245
        %s247 = sand.u32 %s55, 1
        %s248 = smul.addr %s247, 64
        %s249 = scalar_lea.vmem [#allocation4], %s248
        %p250 = pneg %p68
        %p251 = pneg %p65
        %s252 = sand.u32 %s81, 1
        %s253 = scalar_lea.sflag [#allocation8], %s252
        %s254 = sand.u32 %s81, 1
        %s255 = smul.addr %s254, 16
        %s256 = scalar_lea.vmem [#allocation7], %s255
        %p257 = pneg %p94
        %p258 = pneg %p91
        %p259 = pneg %p128
        %p260 = pneg %p125
        %s261 = sand.u32 %s115, 1
        %s262 = scalar_lea.sflag [#allocation6], %s261
        %s263 = sand.u32 %s115, 1
        %s264 = smul.addr %s263, 64
        %s265 = scalar_lea.vmem [#allocation9], %s264
        %p266 = pneg %p154
        %p267 = pneg %p151
        %s268 = sand.u32 %s141, 1
        %s269 = scalar_lea.sflag [#allocation11], %s268
        %s270 = sand.u32 %s141, 1
        %s271 = smul.addr %s270, 8
        %s272 = scalar_lea.vmem [#allocation10], %s271
        %s273 = smul.u32 %s31, 2
        %s274 = ssub.s32 1, %s273
        %s275 = smul.u32 %s32, %s274
        %s276 = smul.u32 8, %s275
        %s277 = smul.u32 %s31, 2
        %s278 = ssub.s32 1, %s277
        %s279 = smul.u32 %s32, %s278
        %s280 = smul.u32 8, %s279
        %p281 = scmp.eq.s32.totalorder %s32, 0
        // Predicated region
        $region37: #{tpu_custom_call.1} parent=27 // pred_check
          %p282 = pneg %p281
        $region38: #{tpu_custom_call.1} parent=27 // pred_check_branch
          %284 = sbr.rel (%p282) target = $region40
        $region39: #{tpu_custom_call.1} parent=27 // pred_region
          %vm285 = vcmask 130048
          %286 = vst.msk [vmem:[#allocation2] sm:$0xff] %vm285, 0.0
          %287 = vst.msk [vmem:[#allocation3] sm:$0xff] %vm285, 0.0
        $region40: #{tpu_custom_call.1} parent=27 // pred_fallthru
          _
        %s288 = smul.u32 %s31, 7
        %s289 = smul.u32 %s288, 8
        %s290 = scalar_lea.vmem %s231, %s289 [#allocation4]
        %v291 = vld [vmem:[%s290] sm:$0xff]
        %v292 = vld [vmem:[#allocation2] sm:$0xff]
        %v293 = vld [vmem:[%s240] sm:$0xff]
        %v294 = vld [vmem:[%s240 + $0x8] sm:$0xff]
        %vm295 = vcmask 130048
        %v297 = vsel %vm295, %v292, 0
        %299 = vmatprep.subr.mxu0 0.0
        %300 = vmatpush1.msra.mxu0 %v293
        %301 = vmatprep.subr.mxu0 0.0
        %302 = vmatpush1.msra.mxu0 %v294
        %303 = vmatprep.subr.mxu0 0.0
        %304 = vmatpush1.msra.mxu0 0.0
        %305 = vmatprep.subr.mxu0 0.0
        %306 = vmatpush1.msra.mxu0 0.0
        %307 = vmatprep.subr.mxu0 0.0
        %308 = vmatpush1.msra.mxu0 0.0
        %309 = vmatprep.subr.mxu0 0.0
        %310 = vmatpush1.msra.mxu0 0.0
        %311 = vmatprep.subr.mxu0 0.0
        %312 = vmatpush1.msra.mxu0 0.0
        %313 = vmatprep.subr.mxu0 0.0
        %314 = vmatpush1.msra.mxu0 0.0
        %315 = vmatprep.subr.mxu0 0.0
        %316 = vmatpush1.msra.mxu0 0.0
        %317 = vmatprep.subr.mxu0 0.0
        %318 = vmatpush1.msra.mxu0 0.0
        %319 = vmatprep.subr.mxu0 0.0
        %320 = vmatpush1.msra.mxu0 0.0
        %321 = vmatprep.subr.mxu0 0.0
        %322 = vmatpush1.msra.mxu0 0.0
        %323 = vmatprep.subr.mxu0 0.0
        %324 = vmatpush1.msra.mxu0 0.0
        %325 = vmatprep.subr.mxu0 0.0
        %326 = vmatpush1.msra.mxu0 0.0
        %327 = vmatprep.subr.mxu0 0.0
        %328 = vmatpush1.msra.mxu0 0.0
        %329 = vmatprep.subr.mxu0 0.0
        %330 = vmatpush1.msra.mxu0 0.0
        %331 = vmatprep.subr.mxu0 0.0
        %332 = vmatpush1.msra.mxu0 0.0
        %333 = vmatprep.subr.mxu0 0.0
        %334 = vmatpush1.msra.mxu0 0.0
        %335 = vmatprep.subr.mxu0 0.0
        %336 = vmatpush1.msra.mxu0 0.0
        %337 = vmatprep.subr.mxu0 0.0
        %338 = vmatpush1.msra.mxu0 0.0
        %339 = vmatprep.subr.mxu0 0.0
        %340 = vmatpush1.msra.mxu0 0.0
        %341 = vmatprep.subr.mxu0 0.0
        %342 = vmatpush1.msra.mxu0 0.0
        %343 = vmatprep.subr.mxu0 0.0
        %344 = vmatpush1.msra.mxu0 0.0
        %345 = vmatprep.subr.mxu0 0.0
        %346 = vmatpush1.msra.mxu0 0.0
        %347 = vmatprep.subr.mxu0 0.0
        %348 = vmatpush1.msra.mxu0 0.0
        %349 = vmatprep.subr.mxu0 0.0
        %350 = vmatpush1.msra.mxu0 0.0
        %351 = vmatprep.subr.mxu0 0.0
        %352 = vmatpush1.msra.mxu0 0.0
        %353 = vmatprep.subr.mxu0 0.0
        %354 = vmatpush1.msra.mxu0 0.0
        %355 = vmatprep.subr.mxu0 0.0
        %356 = vmatpush1.msra.mxu0 0.0
        %357 = vmatprep.subr.mxu0 0.0
        %358 = vmatpush1.msra.mxu0 0.0
        %359 = vmatprep.subr.mxu0 0.0
        %360 = vmatpush1.msra.mxu0 0.0
        %361 = vmatprep.subr.mxu0 0.0
        %362 = vmatpush1.msra.mxu0 0.0
        %363 = vmatprep.mubr.f32.mxu0 0.0
        %364 = vmatmul.mubr.f32.gmra.mrb[0].mxu0 %v297
        %v365 = vpop.f32.mrb[0].mxu0
        %v366 = vadd.f32 0.0, %v365
        %v367 = vpop.f32.mrb[0].mxu0
        %368 = vdwg.mxu0
        %v369 = vadd.f32 %v291, %v366
        %v370 = vxor.u32 %v369, 2147483648
        %v371 = vmul.f32 %v370, 1.442695
        %v372 = vpow.pop %v371
        %v373 = vadd.f32 %v372, 1.0
        %v374 = vrcp.pop %v373
        %v375 = vmul.f32 1.0, %v374
        %v376 = vtanh.pop %v369
        %v377 = vld [vmem:[#allocation3] sm:$0xff]
        %379 = vrot.lane.b32.xlu0 %v377, 16
        %v380 = vpop.permute.xlu0 %379
        %v382 = vmul.f32 %v375, %v380
        %384 = vrot.lane.b32.xlu0 %v376, 80
        %v385 = vpop.permute.xlu0 %384
        %v387 = vmul.f32 %v375, %v385
        %389 = vrot.lane.b32.xlu0 %v387, 16
        %v390 = vpop.permute.xlu0 %389
        %v392 = vadd.f32 %v382, %v390
        %v393 = vtanh.pop %v392
        %395 = vrot.lane.b32.xlu0 %v393, 16
        %v396 = vpop.permute.xlu0 %395
        %v398 = vmul.f32 %v375, %v396
        %400 = vrot.lane.b32.xlu0 %v398, 96
        %v401 = vpop.permute.xlu0 %400
        %403 = vst.msk [vmem:[#allocation2] sm:$0xff] %vm295, %v401
        %405 = vrot.lane.b32.xlu0 %v392, 112
        %v406 = vpop.permute.xlu0 %405
        %408 = vst.msk [vmem:[#allocation3] sm:$0xff] %vm295, %v406
        %s409 = scalar_lea.vmem %s265, %s289 [#allocation9]
        %410 = vst.msk [vmem:[%s409] sm:$0xff] %vm295, %v401
        %s411 = smul.u32 %s31, 2
        %s412 = ssub.s32 1, %s411
        %s413 = sadd.s32 %s412, %s288
        %s414 = smul.u32 %s413, 8
        %s415 = scalar_lea.vmem %s231, %s414 [#allocation4]
        %v416 = vld [vmem:[%s415] sm:$0xff]
        %v417 = vld [vmem:[#allocation2] sm:$0xff]
        %v418 = vld [vmem:[%s240] sm:$0xff]
        %v419 = vld [vmem:[%s240 + $0x8] sm:$0xff]
        %v421 = vsel %vm295, %v417, 0
        %423 = vmatprep.subr.mxu0 0.0
        %424 = vmatpush1.msra.mxu0 %v418
        %425 = vmatprep.subr.mxu0 0.0
        %426 = vmatpush1.msra.mxu0 %v419
        %427 = vmatprep.subr.mxu0 0.0
        %428 = vmatpush1.msra.mxu0 0.0
        %429 = vmatprep.subr.mxu0 0.0
        %430 = vmatpush1.msra.mxu0 0.0
        %431 = vmatprep.subr.mxu0 0.0
        %432 = vmatpush1.msra.mxu0 0.0
        %433 = vmatprep.subr.mxu0 0.0
        %434 = vmatpush1.msra.mxu0 0.0
        %435 = vmatprep.subr.mxu0 0.0
        %436 = vmatpush1.msra.mxu0 0.0
        %437 = vmatprep.subr.mxu0 0.0
        %438 = vmatpush1.msra.mxu0 0.0
        %439 = vmatprep.subr.mxu0 0.0
        %440 = vmatpush1.msra.mxu0 0.0
        %441 = vmatprep.subr.mxu0 0.0
        %442 = vmatpush1.msra.mxu0 0.0
        %443 = vmatprep.subr.mxu0 0.0
        %444 = vmatpush1.msra.mxu0 0.0
        %445 = vmatprep.subr.mxu0 0.0
        %446 = vmatpush1.msra.mxu0 0.0
        %447 = vmatprep.subr.mxu0 0.0
        %448 = vmatpush1.msra.mxu0 0.0
        %449 = vmatprep.subr.mxu0 0.0
        %450 = vmatpush1.msra.mxu0 0.0
        %451 = vmatprep.subr.mxu0 0.0
        %452 = vmatpush1.msra.mxu0 0.0
        %453 = vmatprep.subr.mxu0 0.0
        %454 = vmatpush1.msra.mxu0 0.0
        %455 = vmatprep.subr.mxu0 0.0
        %456 = vmatpush1.msra.mxu0 0.0
        %457 = vmatprep.subr.mxu0 0.0
        %458 = vmatpush1.msra.mxu0 0.0
        %459 = vmatprep.subr.mxu0 0.0
        %460 = vmatpush1.msra.mxu0 0.0
        %461 = vmatprep.subr.mxu0 0.0
        %462 = vmatpush1.msra.mxu0 0.0
        %463 = vmatprep.subr.mxu0 0.0
        %464 = vmatpush1.msra.mxu0 0.0
        %465 = vmatprep.subr.mxu0 0.0
        %466 = vmatpush1.msra.mxu0 0.0
        %467 = vmatprep.subr.mxu0 0.0
        %468 = vmatpush1.msra.mxu0 0.0
        %469 = vmatprep.subr.mxu0 0.0
        %470 = vmatpush1.msra.mxu0 0.0
        %471 = vmatprep.subr.mxu0 0.0
        %472 = vmatpush1.msra.mxu0 0.0
        %473 = vmatprep.subr.mxu0 0.0
        %474 = vmatpush1.msra.mxu0 0.0
        %475 = vmatprep.subr.mxu0 0.0
        %476 = vmatpush1.msra.mxu0 0.0
        %477 = vmatprep.subr.mxu0 0.0
        %478 = vmatpush1.msra.mxu0 0.0
        %479 = vmatprep.subr.mxu0 0.0
        %480 = vmatpush1.msra.mxu0 0.0
        %481 = vmatprep.subr.mxu0 0.0
        %482 = vmatpush1.msra.mxu0 0.0
        %483 = vmatprep.subr.mxu0 0.0
        %484 = vmatpush1.msra.mxu0 0.0
        %485 = vmatprep.subr.mxu0 0.0
        %486 = vmatpush1.msra.mxu0 0.0
        %487 = vmatprep.mubr.f32.mxu0 0.0
        %488 = vmatmul.mubr.f32.gmra.mrb[0].mxu0 %v421
        %v489 = vpop.f32.mrb[0].mxu0
        %v490 = vadd.f32 0.0, %v489
        %v491 = vpop.f32.mrb[0].mxu0
        %492 = vdwg.mxu0
        %v493 = vadd.f32 %v416, %v490
        %v494 = vxor.u32 %v493, 2147483648
        %v495 = vmul.f32 %v494, 1.442695
        %v496 = vpow.pop %v495
        %v497 = vadd.f32 %v496, 1.0
        %v498 = vrcp.pop %v497
        %v499 = vmul.f32 1.0, %v498
        %v500 = vtanh.pop %v493
        %v501 = vld [vmem:[#allocation3] sm:$0xff]
        %503 = vrot.lane.b32.xlu0 %v501, 16
        %v504 = vpop.permute.xlu0 %503
        %v506 = vmul.f32 %v499, %v504
        %508 = vrot.lane.b32.xlu0 %v500, 80
        %v509 = vpop.permute.xlu0 %508
        %v511 = vmul.f32 %v499, %v509
        %513 = vrot.lane.b32.xlu0 %v511, 16
        %v514 = vpop.permute.xlu0 %513
        %v516 = vadd.f32 %v506, %v514
        %v517 = vtanh.pop %v516
        %519 = vrot.lane.b32.xlu0 %v517, 16
        %v520 = vpop.permute.xlu0 %519
        %v522 = vmul.f32 %v499, %v520
        %524 = vrot.lane.b32.xlu0 %v522, 96
        %v525 = vpop.permute.xlu0 %524
        %527 = vst.msk [vmem:[#allocation2] sm:$0xff] %vm295, %v525
        %529 = vrot.lane.b32.xlu0 %v516, 112
        %v530 = vpop.permute.xlu0 %529
        %532 = vst.msk [vmem:[#allocation3] sm:$0xff] %vm295, %v530
        %s533 = scalar_lea.vmem %s265, %s414 [#allocation9]
        %534 = vst.msk [vmem:[%s533] sm:$0xff] %vm295, %v525
        %s535 = smul.u32 %s412, 2
        %s536 = sadd.s32 %s535, %s288
        %s537 = smul.u32 %s536, 8
        %s538 = scalar_lea.vmem %s231, %s537 [#allocation4]
        %v539 = vld [vmem:[%s538] sm:$0xff]
        %v540 = vld [vmem:[#allocation2] sm:$0xff]
        %v541 = vld [vmem:[%s240] sm:$0xff]
        %v542 = vld [vmem:[%s240 + $0x8] sm:$0xff]
        %v544 = vsel %vm295, %v540, 0
        %546 = vmatprep.subr.mxu0 0.0
        %547 = vmatpush1.msra.mxu0 %v541
        %548 = vmatprep.subr.mxu0 0.0
        %549 = vmatpush1.msra.mxu0 %v542
        %550 = vmatprep.subr.mxu0 0.0
        %551 = vmatpush1.msra.mxu0 0.0
        %552 = vmatprep.subr.mxu0 0.0
        %553 = vmatpush1.msra.mxu0 0.0
        %554 = vmatprep.subr.mxu0 0.0
        %555 = vmatpush1.msra.mxu0 0.0
        %556 = vmatprep.subr.mxu0 0.0
        %557 = vmatpush1.msra.mxu0 0.0
        %558 = vmatprep.subr.mxu0 0.0
        %559 = vmatpush1.msra.mxu0 0.0
        %560 = vmatprep.subr.mxu0 0.0
        %561 = vmatpush1.msra.mxu0 0.0
        %562 = vmatprep.subr.mxu0 0.0
        %563 = vmatpush1.msra.mxu0 0.0
        %564 = vmatprep.subr.mxu0 0.0
        %565 = vmatpush1.msra.mxu0 0.0
        %566 = vmatprep.subr.mxu0 0.0
        %567 = vmatpush1.msra.mxu0 0.0
        %568 = vmatprep.subr.mxu0 0.0
        %569 = vmatpush1.msra.mxu0 0.0
        %570 = vmatprep.subr.mxu0 0.0
        %571 = vmatpush1.msra.mxu0 0.0
        %572 = vmatprep.subr.mxu0 0.0
        %573 = vmatpush1.msra.mxu0 0.0
        %574 = vmatprep.subr.mxu0 0.0
        %575 = vmatpush1.msra.mxu0 0.0
        %576 = vmatprep.subr.mxu0 0.0
        %577 = vmatpush1.msra.mxu0 0.0
        %578 = vmatprep.subr.mxu0 0.0
        %579 = vmatpush1.msra.mxu0 0.0
        %580 = vmatprep.subr.mxu0 0.0
        %581 = vmatpush1.msra.mxu0 0.0
        %582 = vmatprep.subr.mxu0 0.0
        %583 = vmatpush1.msra.mxu0 0.0
        %584 = vmatprep.subr.mxu0 0.0
        %585 = vmatpush1.msra.mxu0 0.0
        %586 = vmatprep.subr.mxu0 0.0
        %587 = vmatpush1.msra.mxu0 0.0
        %588 = vmatprep.subr.mxu0 0.0
        %589 = vmatpush1.msra.mxu0 0.0
        %590 = vmatprep.subr.mxu0 0.0
        %591 = vmatpush1.msra.mxu0 0.0
        %592 = vmatprep.subr.mxu0 0.0
        %593 = vmatpush1.msra.mxu0 0.0
        %594 = vmatprep.subr.mxu0 0.0
        %595 = vmatpush1.msra.mxu0 0.0
        %596 = vmatprep.subr.mxu0 0.0
        %597 = vmatpush1.msra.mxu0 0.0
        %598 = vmatprep.subr.mxu0 0.0
        %599 = vmatpush1.msra.mxu0 0.0
        %600 = vmatprep.subr.mxu0 0.0
        %601 = vmatpush1.msra.mxu0 0.0
        %602 = vmatprep.subr.mxu0 0.0
        %603 = vmatpush1.msra.mxu0 0.0
        %604 = vmatprep.subr.mxu0 0.0
        %605 = vmatpush1.msra.mxu0 0.0
        %606 = vmatprep.subr.mxu0 0.0
        %607 = vmatpush1.msra.mxu0 0.0
        %608 = vmatprep.subr.mxu0 0.0
        %609 = vmatpush1.msra.mxu0 0.0
        %610 = vmatprep.mubr.f32.mxu0 0.0
        %611 = vmatmul.mubr.f32.gmra.mrb[0].mxu0 %v544
        %v612 = vpop.f32.mrb[0].mxu0
        %v613 = vadd.f32 0.0, %v612
        %v614 = vpop.f32.mrb[0].mxu0
        %615 = vdwg.mxu0
        %v616 = vadd.f32 %v539, %v613
        %v617 = vxor.u32 %v616, 2147483648
        %v618 = vmul.f32 %v617, 1.442695
        %v619 = vpow.pop %v618
        %v620 = vadd.f32 %v619, 1.0
        %v621 = vrcp.pop %v620
        %v622 = vmul.f32 1.0, %v621
        %v623 = vtanh.pop %v616
        %v624 = vld [vmem:[#allocation3] sm:$0xff]
        %626 = vrot.lane.b32.xlu0 %v624, 16
        %v627 = vpop.permute.xlu0 %626
        %v629 = vmul.f32 %v622, %v627
        %631 = vrot.lane.b32.xlu0 %v623, 80
        %v632 = vpop.permute.xlu0 %631
        %v634 = vmul.f32 %v622, %v632
        %636 = vrot.lane.b32.xlu0 %v634, 16
        %v637 = vpop.permute.xlu0 %636
        %v639 = vadd.f32 %v629, %v637
        %v640 = vtanh.pop %v639
        %642 = vrot.lane.b32.xlu0 %v640, 16
        %v643 = vpop.permute.xlu0 %642
        %v645 = vmul.f32 %v622, %v643
        %647 = vrot.lane.b32.xlu0 %v645, 96
        %v648 = vpop.permute.xlu0 %647
        %650 = vst.msk [vmem:[#allocation2] sm:$0xff] %vm295, %v648
        %652 = vrot.lane.b32.xlu0 %v639, 112
        %v653 = vpop.permute.xlu0 %652
        %655 = vst.msk [vmem:[#allocation3] sm:$0xff] %vm295, %v653
        %s656 = scalar_lea.vmem %s265, %s537 [#allocation9]
        %657 = vst.msk [vmem:[%s656] sm:$0xff] %vm295, %v648
        %s658 = smul.u32 %s412, 3
        %s659 = sadd.s32 %s658, %s288
        %s660 = smul.u32 %s659, 8
        %s661 = scalar_lea.vmem %s231, %s660 [#allocation4]
        %v662 = vld [vmem:[%s661] sm:$0xff]
        %v663 = vld [vmem:[#allocation2] sm:$0xff]
        %v664 = vld [vmem:[%s240] sm:$0xff]
        %v665 = vld [vmem:[%s240 + $0x8] sm:$0xff]
        %v667 = vsel %vm295, %v663, 0
        %669 = vmatprep.subr.mxu0 0.0
        %670 = vmatpush1.msra.mxu0 %v664
        %671 = vmatprep.subr.mxu0 0.0
        %672 = vmatpush1.msra.mxu0 %v665
        %673 = vmatprep.subr.mxu0 0.0
        %674 = vmatpush1.msra.mxu0 0.0
        %675 = vmatprep.subr.mxu0 0.0
        %676 = vmatpush1.msra.mxu0 0.0
        %677 = vmatprep.subr.mxu0 0.0
        %678 = vmatpush1.msra.mxu0 0.0
        %679 = vmatprep.subr.mxu0 0.0
        %680 = vmatpush1.msra.mxu0 0.0
        %681 = vmatprep.subr.mxu0 0.0
        %682 = vmatpush1.msra.mxu0 0.0
        %683 = vmatprep.subr.mxu0 0.0
        %684 = vmatpush1.msra.mxu0 0.0
        %685 = vmatprep.subr.mxu0 0.0
        %686 = vmatpush1.msra.mxu0 0.0
        %687 = vmatprep.subr.mxu0 0.0
        %688 = vmatpush1.msra.mxu0 0.0
        %689 = vmatprep.subr.mxu0 0.0
        %690 = vmatpush1.msra.mxu0 0.0
        %691 = vmatprep.subr.mxu0 0.0
        %692 = vmatpush1.msra.mxu0 0.0
        %693 = vmatprep.subr.mxu0 0.0
        %694 = vmatpush1.msra.mxu0 0.0
        %695 = vmatprep.subr.mxu0 0.0
        %696 = vmatpush1.msra.mxu0 0.0
        %697 = vmatprep.subr.mxu0 0.0
        %698 = vmatpush1.msra.mxu0 0.0
        %699 = vmatprep.subr.mxu0 0.0
        %700 = vmatpush1.msra.mxu0 0.0
        %701 = vmatprep.subr.mxu0 0.0
        %702 = vmatpush1.msra.mxu0 0.0
        %703 = vmatprep.subr.mxu0 0.0
        %704 = vmatpush1.msra.mxu0 0.0
        %705 = vmatprep.subr.mxu0 0.0
        %706 = vmatpush1.msra.mxu0 0.0
        %707 = vmatprep.subr.mxu0 0.0
        %708 = vmatpush1.msra.mxu0 0.0
        %709 = vmatprep.subr.mxu0 0.0
        %710 = vmatpush1.msra.mxu0 0.0
        %711 = vmatprep.subr.mxu0 0.0
        %712 = vmatpush1.msra.mxu0 0.0
        %713 = vmatprep.subr.mxu0 0.0
        %714 = vmatpush1.msra.mxu0 0.0
        %715 = vmatprep.subr.mxu0 0.0
        %716 = vmatpush1.msra.mxu0 0.0
        %717 = vmatprep.subr.mxu0 0.0
        %718 = vmatpush1.msra.mxu0 0.0
        %719 = vmatprep.subr.mxu0 0.0
        %720 = vmatpush1.msra.mxu0 0.0
        %721 = vmatprep.subr.mxu0 0.0
        %722 = vmatpush1.msra.mxu0 0.0
        %723 = vmatprep.subr.mxu0 0.0
        %724 = vmatpush1.msra.mxu0 0.0
        %725 = vmatprep.subr.mxu0 0.0
        %726 = vmatpush1.msra.mxu0 0.0
        %727 = vmatprep.subr.mxu0 0.0
        %728 = vmatpush1.msra.mxu0 0.0
        %729 = vmatprep.subr.mxu0 0.0
        %730 = vmatpush1.msra.mxu0 0.0
        %731 = vmatprep.subr.mxu0 0.0
        %732 = vmatpush1.msra.mxu0 0.0
        %733 = vmatprep.mubr.f32.mxu0 0.0
        %734 = vmatmul.mubr.f32.gmra.mrb[0].mxu0 %v667
        %v735 = vpop.f32.mrb[0].mxu0
        %v736 = vadd.f32 0.0, %v735
        %v737 = vpop.f32.mrb[0].mxu0
        %738 = vdwg.mxu0
        %v739 = vadd.f32 %v662, %v736
        %v740 = vxor.u32 %v739, 2147483648
        %v741 = vmul.f32 %v740, 1.442695
        %v742 = vpow.pop %v741
        %v743 = vadd.f32 %v742, 1.0
        %v744 = vrcp.pop %v743
        %v745 = vmul.f32 1.0, %v744
        %v746 = vtanh.pop %v739
        %v747 = vld [vmem:[#allocation3] sm:$0xff]
        %749 = vrot.lane.b32.xlu0 %v747, 16
        %v750 = vpop.permute.xlu0 %749
        %v752 = vmul.f32 %v745, %v750
        %754 = vrot.lane.b32.xlu0 %v746, 80
        %v755 = vpop.permute.xlu0 %754
        %v757 = vmul.f32 %v745, %v755
        %759 = vrot.lane.b32.xlu0 %v757, 16
        %v760 = vpop.permute.xlu0 %759
        %v762 = vadd.f32 %v752, %v760
        %v763 = vtanh.pop %v762
        %765 = vrot.lane.b32.xlu0 %v763, 16
        %v766 = vpop.permute.xlu0 %765
        %v768 = vmul.f32 %v745, %v766
        %770 = vrot.lane.b32.xlu0 %v768, 96
        %v771 = vpop.permute.xlu0 %770
        %773 = vst.msk [vmem:[#allocation2] sm:$0xff] %vm295, %v771
        %775 = vrot.lane.b32.xlu0 %v762, 112
        %v776 = vpop.permute.xlu0 %775
        %778 = vst.msk [vmem:[#allocation3] sm:$0xff] %vm295, %v776
        %s779 = scalar_lea.vmem %s265, %s660 [#allocation9]
        %780 = vst.msk [vmem:[%s779] sm:$0xff] %vm295, %v771
        %s781 = smul.u32 %s412, 4
        %s782 = sadd.s32 %s781, %s288
        %s783 = smul.u32 %s782, 8
        %s784 = scalar_lea.vmem %s231, %s783 [#allocation4]
        %v785 = vld [vmem:[%s784] sm:$0xff]
        %v786 = vld [vmem:[#allocation2] sm:$0xff]
        %v787 = vld [vmem:[%s240] sm:$0xff]
        %v788 = vld [vmem:[%s240 + $0x8] sm:$0xff]
        %v790 = vsel %vm295, %v786, 0
        %792 = vmatprep.subr.mxu0 0.0
        %793 = vmatpush1.msra.mxu0 %v787
        %794 = vmatprep.subr.mxu0 0.0
        %795 = vmatpush1.msra.mxu0 %v788
        %796 = vmatprep.subr.mxu0 0.0
        %797 = vmatpush1.msra.mxu0 0.0
        %798 = vmatprep.subr.mxu0 0.0
        %799 = vmatpush1.msra.mxu0 0.0
        %800 = vmatprep.subr.mxu0 0.0
        %801 = vmatpush1.msra.mxu0 0.0
        %802 = vmatprep.subr.mxu0 0.0
        %803 = vmatpush1.msra.mxu0 0.0
        %804 = vmatprep.subr.mxu0 0.0
        %805 = vmatpush1.msra.mxu0 0.0
        %806 = vmatprep.subr.mxu0 0.0
        %807 = vmatpush1.msra.mxu0 0.0
        %808 = vmatprep.subr.mxu0 0.0
        %809 = vmatpush1.msra.mxu0 0.0
        %810 = vmatprep.subr.mxu0 0.0
        %811 = vmatpush1.msra.mxu0 0.0
        %812 = vmatprep.subr.mxu0 0.0
        %813 = vmatpush1.msra.mxu0 0.0
        %814 = vmatprep.subr.mxu0 0.0
        %815 = vmatpush1.msra.mxu0 0.0
        %816 = vmatprep.subr.mxu0 0.0
        %817 = vmatpush1.msra.mxu0 0.0
        %818 = vmatprep.subr.mxu0 0.0
        %819 = vmatpush1.msra.mxu0 0.0
        %820 = vmatprep.subr.mxu0 0.0
        %821 = vmatpush1.msra.mxu0 0.0
        %822 = vmatprep.subr.mxu0 0.0
        %823 = vmatpush1.msra.mxu0 0.0
        %824 = vmatprep.subr.mxu0 0.0
        %825 = vmatpush1.msra.mxu0 0.0
        %826 = vmatprep.subr.mxu0 0.0
        %827 = vmatpush1.msra.mxu0 0.0
        %828 = vmatprep.subr.mxu0 0.0
        %829 = vmatpush1.msra.mxu0 0.0
        %830 = vmatprep.subr.mxu0 0.0
        %831 = vmatpush1.msra.mxu0 0.0
        %832 = vmatprep.subr.mxu0 0.0
        %833 = vmatpush1.msra.mxu0 0.0
        %834 = vmatprep.subr.mxu0 0.0
        %835 = vmatpush1.msra.mxu0 0.0
        %836 = vmatprep.subr.mxu0 0.0
        %837 = vmatpush1.msra.mxu0 0.0
        %838 = vmatprep.subr.mxu0 0.0
        %839 = vmatpush1.msra.mxu0 0.0
        %840 = vmatprep.subr.mxu0 0.0
        %841 = vmatpush1.msra.mxu0 0.0
        %842 = vmatprep.subr.mxu0 0.0
        %843 = vmatpush1.msra.mxu0 0.0
        %844 = vmatprep.subr.mxu0 0.0
        %845 = vmatpush1.msra.mxu0 0.0
        %846 = vmatprep.subr.mxu0 0.0
        %847 = vmatpush1.msra.mxu0 0.0
        %848 = vmatprep.subr.mxu0 0.0
        %849 = vmatpush1.msra.mxu0 0.0
        %850 = vmatprep.subr.mxu0 0.0
        %851 = vmatpush1.msra.mxu0 0.0
        %852 = vmatprep.subr.mxu0 0.0
        %853 = vmatpush1.msra.mxu0 0.0
        %854 = vmatprep.subr.mxu0 0.0
        %855 = vmatpush1.msra.mxu0 0.0
        %856 = vmatprep.mubr.f32.mxu0 0.0
        %857 = vmatmul.mubr.f32.gmra.mrb[0].mxu0 %v790
        %v858 = vpop.f32.mrb[0].mxu0
        %v859 = vadd.f32 0.0, %v858
        %v860 = vpop.f32.mrb[0].mxu0
        %861 = vdwg.mxu0
        %v862 = vadd.f32 %v785, %v859
        %v863 = vxor.u32 %v862, 2147483648
        %v864 = vmul.f32 %v863, 1.442695
        %v865 = vpow.pop %v864
        %v866 = vadd.f32 %v865, 1.0
        %v867 = vrcp.pop %v866
        %v868 = vmul.f32 1.0, %v867
        %v869 = vtanh.pop %v862
        %v870 = vld [vmem:[#allocation3] sm:$0xff]
        %872 = vrot.lane.b32.xlu0 %v870, 16
        %v873 = vpop.permute.xlu0 %872
        %v875 = vmul.f32 %v868, %v873
        %877 = vrot.lane.b32.xlu0 %v869, 80
        %v878 = vpop.permute.xlu0 %877
        %v880 = vmul.f32 %v868, %v878
        %882 = vrot.lane.b32.xlu0 %v880, 16
        %v883 = vpop.permute.xlu0 %882
        %v885 = vadd.f32 %v875, %v883
        %v886 = vtanh.pop %v885
        %888 = vrot.lane.b32.xlu0 %v886, 16
        %v889 = vpop.permute.xlu0 %888
        %v891 = vmul.f32 %v868, %v889
        %893 = vrot.lane.b32.xlu0 %v891, 96
        %v894 = vpop.permute.xlu0 %893
        %896 = vst.msk [vmem:[#allocation2] sm:$0xff] %vm295, %v894
        %898 = vrot.lane.b32.xlu0 %v885, 112
        %v899 = vpop.permute.xlu0 %898
        %901 = vst.msk [vmem:[#allocation3] sm:$0xff] %vm295, %v899
        %s902 = scalar_lea.vmem %s265, %s783 [#allocation9]
        %903 = vst.msk [vmem:[%s902] sm:$0xff] %vm295, %v894
        %s904 = smul.u32 %s412, 5
        %s905 = sadd.s32 %s904, %s288
        %s906 = smul.u32 %s905, 8
        %s907 = scalar_lea.vmem %s231, %s906 [#allocation4]
        %v908 = vld [vmem:[%s907] sm:$0xff]
        %v909 = vld [vmem:[#allocation2] sm:$0xff]
        %v910 = vld [vmem:[%s240] sm:$0xff]
        %v911 = vld [vmem:[%s240 + $0x8] sm:$0xff]
        %v913 = vsel %vm295, %v909, 0
        %915 = vmatprep.subr.mxu0 0.0
        %916 = vmatpush1.msra.mxu0 %v910
        %917 = vmatprep.subr.mxu0 0.0
        %918 = vmatpush1.msra.mxu0 %v911
        %919 = vmatprep.subr.mxu0 0.0
        %920 = vmatpush1.msra.mxu0 0.0
        %921 = vmatprep.subr.mxu0 0.0
        %922 = vmatpush1.msra.mxu0 0.0
        %923 = vmatprep.subr.mxu0 0.0
        %924 = vmatpush1.msra.mxu0 0.0
        %925 = vmatprep.subr.mxu0 0.0
        %926 = vmatpush1.msra.mxu0 0.0
        %927 = vmatprep.subr.mxu0 0.0
        %928 = vmatpush1.msra.mxu0 0.0
        %929 = vmatprep.subr.mxu0 0.0
        %930 = vmatpush1.msra.mxu0 0.0
        %931 = vmatprep.subr.mxu0 0.0
        %932 = vmatpush1.msra.mxu0 0.0
        %933 = vmatprep.subr.mxu0 0.0
        %934 = vmatpush1.msra.mxu0 0.0
        %935 = vmatprep.subr.mxu0 0.0
        %936 = vmatpush1.msra.mxu0 0.0
        %937 = vmatprep.subr.mxu0 0.0
        %938 = vmatpush1.msra.mxu0 0.0
        %939 = vmatprep.subr.mxu0 0.0
        %940 = vmatpush1.msra.mxu0 0.0
        %941 = vmatprep.subr.mxu0 0.0
        %942 = vmatpush1.msra.mxu0 0.0
        %943 = vmatprep.subr.mxu0 0.0
        %944 = vmatpush1.msra.mxu0 0.0
        %945 = vmatprep.subr.mxu0 0.0
        %946 = vmatpush1.msra.mxu0 0.0
        %947 = vmatprep.subr.mxu0 0.0
        %948 = vmatpush1.msra.mxu0 0.0
        %949 = vmatprep.subr.mxu0 0.0
        %950 = vmatpush1.msra.mxu0 0.0
        %951 = vmatprep.subr.mxu0 0.0
        %952 = vmatpush1.msra.mxu0 0.0
        %953 = vmatprep.subr.mxu0 0.0
        %954 = vmatpush1.msra.mxu0 0.0
        %955 = vmatprep.subr.mxu0 0.0
        %956 = vmatpush1.msra.mxu0 0.0
        %957 = vmatprep.subr.mxu0 0.0
        %958 = vmatpush1.msra.mxu0 0.0
        %959 = vmatprep.subr.mxu0 0.0
        %960 = vmatpush1.msra.mxu0 0.0
        %961 = vmatprep.subr.mxu0 0.0
        %962 = vmatpush1.msra.mxu0 0.0
        %963 = vmatprep.subr.mxu0 0.0
        %964 = vmatpush1.msra.mxu0 0.0
        %965 = vmatprep.subr.mxu0 0.0
        %966 = vmatpush1.msra.mxu0 0.0
        %967 = vmatprep.subr.mxu0 0.0
        %968 = vmatpush1.msra.mxu0 0.0
        %969 = vmatprep.subr.mxu0 0.0
        %970 = vmatpush1.msra.mxu0 0.0
        %971 = vmatprep.subr.mxu0 0.0
        %972 = vmatpush1.msra.mxu0 0.0
        %973 = vmatprep.subr.mxu0 0.0
        %974 = vmatpush1.msra.mxu0 0.0
        %975 = vmatprep.subr.mxu0 0.0
        %976 = vmatpush1.msra.mxu0 0.0
        %977 = vmatprep.subr.mxu0 0.0
        %978 = vmatpush1.msra.mxu0 0.0
        %979 = vmatprep.mubr.f32.mxu0 0.0
        %980 = vmatmul.mubr.f32.gmra.mrb[0].mxu0 %v913
        %v981 = vpop.f32.mrb[0].mxu0
        %v982 = vadd.f32 0.0, %v981
        %v983 = vpop.f32.mrb[0].mxu0
        %984 = vdwg.mxu0
        %v985 = vadd.f32 %v908, %v982
        %v986 = vxor.u32 %v985, 2147483648
        %v987 = vmul.f32 %v986, 1.442695
        %v988 = vpow.pop %v987
        %v989 = vadd.f32 %v988, 1.0
        %v990 = vrcp.pop %v989
        %v991 = vmul.f32 1.0, %v990
        %v992 = vtanh.pop %v985
        %v993 = vld [vmem:[#allocation3] sm:$0xff]
        %995 = vrot.lane.b32.xlu0 %v993, 16
        %v996 = vpop.permute.xlu0 %995
        %v998 = vmul.f32 %v991, %v996
        %1000 = vrot.lane.b32.xlu0 %v992, 80
        %v1001 = vpop.permute.xlu0 %1000
        %v1003 = vmul.f32 %v991, %v1001
        %1005 = vrot.lane.b32.xlu0 %v1003, 16
        %v1006 = vpop.permute.xlu0 %1005
        %v1008 = vadd.f32 %v998, %v1006
        %v1009 = vtanh.pop %v1008
        %1011 = vrot.lane.b32.xlu0 %v1009, 16
        %v1012 = vpop.permute.xlu0 %1011
        %v1014 = vmul.f32 %v991, %v1012
        %1016 = vrot.lane.b32.xlu0 %v1014, 96
        %v1017 = vpop.permute.xlu0 %1016
        %1019 = vst.msk [vmem:[#allocation2] sm:$0xff] %vm295, %v1017
        %1021 = vrot.lane.b32.xlu0 %v1008, 112
        %v1022 = vpop.permute.xlu0 %1021
        %1024 = vst.msk [vmem:[#allocation3] sm:$0xff] %vm295, %v1022
        %s1025 = scalar_lea.vmem %s265, %s906 [#allocation9]
        %1026 = vst.msk [vmem:[%s1025] sm:$0xff] %vm295, %v1017
        %s1027 = smul.u32 %s412, 6
        %s1028 = sadd.s32 %s1027, %s288
        %s1029 = smul.u32 %s1028, 8
        %s1030 = scalar_lea.vmem %s231, %s1029 [#allocation4]
        %v1031 = vld [vmem:[%s1030] sm:$0xff]
        %v1032 = vld [vmem:[#allocation2] sm:$0xff]
        %v1033 = vld [vmem:[%s240] sm:$0xff]
        %v1034 = vld [vmem:[%s240 + $0x8] sm:$0xff]
        %v1036 = vsel %vm295, %v1032, 0
        %1038 = vmatprep.subr.mxu0 0.0
        %1039 = vmatpush1.msra.mxu0 %v1033
        %1040 = vmatprep.subr.mxu0 0.0
        %1041 = vmatpush1.msra.mxu0 %v1034
        %1042 = vmatprep.subr.mxu0 0.0
        %1043 = vmatpush1.msra.mxu0 0.0
        %1044 = vmatprep.subr.mxu0 0.0
        %1045 = vmatpush1.msra.mxu0 0.0
        %1046 = vmatprep.subr.mxu0 0.0
        %1047 = vmatpush1.msra.mxu0 0.0
        %1048 = vmatprep.subr.mxu0 0.0
        %1049 = vmatpush1.msra.mxu0 0.0
        %1050 = vmatprep.subr.mxu0 0.0
        %1051 = vmatpush1.msra.mxu0 0.0
        %1052 = vmatprep.subr.mxu0 0.0
        %1053 = vmatpush1.msra.mxu0 0.0
        %1054 = vmatprep.subr.mxu0 0.0
        %1055 = vmatpush1.msra.mxu0 0.0
        %1056 = vmatprep.subr.mxu0 0.0
        %1057 = vmatpush1.msra.mxu0 0.0
        %1058 = vmatprep.subr.mxu0 0.0
        %1059 = vmatpush1.msra.mxu0 0.0
        %1060 = vmatprep.subr.mxu0 0.0
        %1061 = vmatpush1.msra.mxu0 0.0
        %1062 = vmatprep.subr.mxu0 0.0
        %1063 = vmatpush1.msra.mxu0 0.0
        %1064 = vmatprep.subr.mxu0 0.0
        %1065 = vmatpush1.msra.mxu0 0.0
        %1066 = vmatprep.subr.mxu0 0.0
        %1067 = vmatpush1.msra.mxu0 0.0
        %1068 = vmatprep.subr.mxu0 0.0
        %1069 = vmatpush1.msra.mxu0 0.0
        %1070 = vmatprep.subr.mxu0 0.0
        %1071 = vmatpush1.msra.mxu0 0.0
        %1072 = vmatprep.subr.mxu0 0.0
        %1073 = vmatpush1.msra.mxu0 0.0
        %1074 = vmatprep.subr.mxu0 0.0
        %1075 = vmatpush1.msra.mxu0 0.0
        %1076 = vmatprep.subr.mxu0 0.0
        %1077 = vmatpush1.msra.mxu0 0.0
        %1078 = vmatprep.subr.mxu0 0.0
        %1079 = vmatpush1.msra.mxu0 0.0
        %1080 = vmatprep.subr.mxu0 0.0
        %1081 = vmatpush1.msra.mxu0 0.0
        %1082 = vmatprep.subr.mxu0 0.0
        %1083 = vmatpush1.msra.mxu0 0.0
        %1084 = vmatprep.subr.mxu0 0.0
        %1085 = vmatpush1.msra.mxu0 0.0
        %1086 = vmatprep.subr.mxu0 0.0
        %1087 = vmatpush1.msra.mxu0 0.0
        %1088 = vmatprep.subr.mxu0 0.0
        %1089 = vmatpush1.msra.mxu0 0.0
        %1090 = vmatprep.subr.mxu0 0.0
        %1091 = vmatpush1.msra.mxu0 0.0
        %1092 = vmatprep.subr.mxu0 0.0
        %1093 = vmatpush1.msra.mxu0 0.0
        %1094 = vmatprep.subr.mxu0 0.0
        %1095 = vmatpush1.msra.mxu0 0.0
        %1096 = vmatprep.subr.mxu0 0.0
        %1097 = vmatpush1.msra.mxu0 0.0
        %1098 = vmatprep.subr.mxu0 0.0
        %1099 = vmatpush1.msra.mxu0 0.0
        %1100 = vmatprep.subr.mxu0 0.0
        %1101 = vmatpush1.msra.mxu0 0.0
        %1102 = vmatprep.mubr.f32.mxu0 0.0
        %1103 = vmatmul.mubr.f32.gmra.mrb[0].mxu0 %v1036
        %v1104 = vpop.f32.mrb[0].mxu0
        %v1105 = vadd.f32 0.0, %v1104
        %v1106 = vpop.f32.mrb[0].mxu0
        %1107 = vdwg.mxu0
        %v1108 = vadd.f32 %v1031, %v1105
        %v1109 = vxor.u32 %v1108, 2147483648
        %v1110 = vmul.f32 %v1109, 1.442695
        %v1111 = vpow.pop %v1110
        %v1112 = vadd.f32 %v1111, 1.0
        %v1113 = vrcp.pop %v1112
        %v1114 = vmul.f32 1.0, %v1113
        %v1115 = vtanh.pop %v1108
        %v1116 = vld [vmem:[#allocation3] sm:$0xff]
        %1118 = vrot.lane.b32.xlu0 %v1116, 16
        %v1119 = vpop.permute.xlu0 %1118
        %v1121 = vmul.f32 %v1114, %v1119
        %1123 = vrot.lane.b32.xlu0 %v1115, 80
        %v1124 = vpop.permute.xlu0 %1123
        %v1126 = vmul.f32 %v1114, %v1124
        %1128 = vrot.lane.b32.xlu0 %v1126, 16
        %v1129 = vpop.permute.xlu0 %1128
        %v1131 = vadd.f32 %v1121, %v1129
        %v1132 = vtanh.pop %v1131
        %1134 = vrot.lane.b32.xlu0 %v1132, 16
        %v1135 = vpop.permute.xlu0 %1134
        %v1137 = vmul.f32 %v1114, %v1135
        %1139 = vrot.lane.b32.xlu0 %v1137, 96
        %v1140 = vpop.permute.xlu0 %1139
        %1142 = vst.msk [vmem:[#allocation2] sm:$0xff] %vm295, %v1140
        %1144 = vrot.lane.b32.xlu0 %v1131, 112
        %v1145 = vpop.permute.xlu0 %1144
        %1147 = vst.msk [vmem:[#allocation3] sm:$0xff] %vm295, %v1145
        %s1148 = scalar_lea.vmem %s265, %s1029 [#allocation9]
        %1149 = vst.msk [vmem:[%s1148] sm:$0xff] %vm295, %v1140
        %s1150 = smul.u32 %s412, 7
        %s1151 = sadd.s32 %s1150, %s288
        %s1152 = smul.u32 %s1151, 8
        %s1153 = scalar_lea.vmem %s231, %s1152 [#allocation4]
        %v1154 = vld [vmem:[%s1153] sm:$0xff]
        %v1155 = vld [vmem:[#allocation2] sm:$0xff]
        %v1156 = vld [vmem:[%s240] sm:$0xff]
        %v1157 = vld [vmem:[%s240 + $0x8] sm:$0xff]
        %v1159 = vsel %vm295, %v1155, 0
        %1161 = vmatprep.subr.mxu0 0.0
        %1162 = vmatpush1.msra.mxu0 %v1156
        %1163 = vmatprep.subr.mxu0 0.0
        %1164 = vmatpush1.msra.mxu0 %v1157
        %1165 = vmatprep.subr.mxu0 0.0
        %1166 = vmatpush1.msra.mxu0 0.0
        %1167 = vmatprep.subr.mxu0 0.0
        %1168 = vmatpush1.msra.mxu0 0.0
        %1169 = vmatprep.subr.mxu0 0.0
        %1170 = vmatpush1.msra.mxu0 0.0
        %1171 = vmatprep.subr.mxu0 0.0
        %1172 = vmatpush1.msra.mxu0 0.0
        %1173 = vmatprep.subr.mxu0 0.0
        %1174 = vmatpush1.msra.mxu0 0.0
        %1175 = vmatprep.subr.mxu0 0.0
        %1176 = vmatpush1.msra.mxu0 0.0
        %1177 = vmatprep.subr.mxu0 0.0
        %1178 = vmatpush1.msra.mxu0 0.0
        %1179 = vmatprep.subr.mxu0 0.0
        %1180 = vmatpush1.msra.mxu0 0.0
        %1181 = vmatprep.subr.mxu0 0.0
        %1182 = vmatpush1.msra.mxu0 0.0
        %1183 = vmatprep.subr.mxu0 0.0
        %1184 = vmatpush1.msra.mxu0 0.0
        %1185 = vmatprep.subr.mxu0 0.0
        %1186 = vmatpush1.msra.mxu0 0.0
        %1187 = vmatprep.subr.mxu0 0.0
        %1188 = vmatpush1.msra.mxu0 0.0
        %1189 = vmatprep.subr.mxu0 0.0
        %1190 = vmatpush1.msra.mxu0 0.0
        %1191 = vmatprep.subr.mxu0 0.0
        %1192 = vmatpush1.msra.mxu0 0.0
        %1193 = vmatprep.subr.mxu0 0.0
        %1194 = vmatpush1.msra.mxu0 0.0
        %1195 = vmatprep.subr.mxu0 0.0
        %1196 = vmatpush1.msra.mxu0 0.0
        %1197 = vmatprep.subr.mxu0 0.0
        %1198 = vmatpush1.msra.mxu0 0.0
        %1199 = vmatprep.subr.mxu0 0.0
        %1200 = vmatpush1.msra.mxu0 0.0
        %1201 = vmatprep.subr.mxu0 0.0
        %1202 = vmatpush1.msra.mxu0 0.0
        %1203 = vmatprep.subr.mxu0 0.0
        %1204 = vmatpush1.msra.mxu0 0.0
        %1205 = vmatprep.subr.mxu0 0.0
        %1206 = vmatpush1.msra.mxu0 0.0
        %1207 = vmatprep.subr.mxu0 0.0
        %1208 = vmatpush1.msra.mxu0 0.0
        %1209 = vmatprep.subr.mxu0 0.0
        %1210 = vmatpush1.msra.mxu0 0.0
        %1211 = vmatprep.subr.mxu0 0.0
        %1212 = vmatpush1.msra.mxu0 0.0
        %1213 = vmatprep.subr.mxu0 0.0
        %1214 = vmatpush1.msra.mxu0 0.0
        %1215 = vmatprep.subr.mxu0 0.0
        %1216 = vmatpush1.msra.mxu0 0.0
        %1217 = vmatprep.subr.mxu0 0.0
        %1218 = vmatpush1.msra.mxu0 0.0
        %1219 = vmatprep.subr.mxu0 0.0
        %1220 = vmatpush1.msra.mxu0 0.0
        %1221 = vmatprep.subr.mxu0 0.0
        %1222 = vmatpush1.msra.mxu0 0.0
        %1223 = vmatprep.subr.mxu0 0.0
        %1224 = vmatpush1.msra.mxu0 0.0
        %1225 = vmatprep.mubr.f32.mxu0 0.0
        %1226 = vmatmul.mubr.f32.gmra.mrb[0].mxu0 %v1159
        %v1227 = vpop.f32.mrb[0].mxu0
        %v1228 = vadd.f32 0.0, %v1227
        %v1229 = vpop.f32.mrb[0].mxu0
        %1230 = vdwg.mxu0
        %v1231 = vadd.f32 %v1154, %v1228
        %v1232 = vxor.u32 %v1231, 2147483648
        %v1233 = vmul.f32 %v1232, 1.442695
        %v1234 = vpow.pop %v1233
        %v1235 = vadd.f32 %v1234, 1.0
        %v1236 = vrcp.pop %v1235
        %v1237 = vmul.f32 1.0, %v1236
        %v1238 = vtanh.pop %v1231
        %v1239 = vld [vmem:[#allocation3] sm:$0xff]
        %1241 = vrot.lane.b32.xlu0 %v1239, 16
        %v1242 = vpop.permute.xlu0 %1241
        %v1244 = vmul.f32 %v1237, %v1242
        %1246 = vrot.lane.b32.xlu0 %v1238, 80
        %v1247 = vpop.permute.xlu0 %1246
        %v1249 = vmul.f32 %v1237, %v1247
        %1251 = vrot.lane.b32.xlu0 %v1249, 16
        %v1252 = vpop.permute.xlu0 %1251
        %v1254 = vadd.f32 %v1244, %v1252
        %v1255 = vtanh.pop %v1254
        %1257 = vrot.lane.b32.xlu0 %v1255, 16
        %v1258 = vpop.permute.xlu0 %1257
        %v1260 = vmul.f32 %v1237, %v1258
        %1262 = vrot.lane.b32.xlu0 %v1260, 96
        %v1263 = vpop.permute.xlu0 %1262
        %1265 = vst.msk [vmem:[#allocation2] sm:$0xff] %vm295, %v1263
        %1267 = vrot.lane.b32.xlu0 %v1254, 112
        %v1268 = vpop.permute.xlu0 %1267
        %1270 = vst.msk [vmem:[#allocation3] sm:$0xff] %vm295, %v1268
        %s1271 = scalar_lea.vmem %s265, %s1152 [#allocation9]
        %1272 = vst.msk [vmem:[%s1271] sm:$0xff] %vm295, %v1263
        // Predicated region
        $region41: #{tpu_custom_call.1} parent=27 // pred_check
          %p1273 = pneg %p281
        $region42: #{tpu_custom_call.1} parent=27 // pred_check_branch
          %1275 = sbr.rel (%p1273) target = $region44
        $region43: #{tpu_custom_call.1} parent=27 // pred_region
          %v1276 = vld [vmem:[#allocation3] sm:$0xff]
          %1277 = vst.msk [vmem:[%s272] sm:$0xff] %vm295, %v1276
        $region44: #{tpu_custom_call.1} parent=27 // pred_fallthru
          _
        %s1278 = sand.u32 %s115, 1
        %s1279 = scalar_lea.sflag [#allocation6], %s1278
        %s1280 = sand.u32 %s115, 1
        %s1281 = smul.addr %s1280, 64
        %s1282 = scalar_lea.vmem [#allocation9], %s1281
        %s1283 = sand.u32 %s141, 1
        %s1284 = scalar_lea.sflag [#allocation11], %s1283
        %s1285 = sand.u32 %s141, 1
        %s1286 = smul.addr %s1285, 8
        %s1287 = scalar_lea.vmem [#allocation10], %s1286
        // Predicated region
        $region45: #{tpu_custom_call.1} parent=27 // pred_check
          %p1288 = pneg %p125
        $region46: #{tpu_custom_call.1} parent=27 // pred_check_branch
          %1290 = sbr.rel (%p1288) target = $region48
        $region47: #{tpu_custom_call.1} parent=27 // pred_region
          %s1291 = smul.u32 %s31, 2
          %s1292 = ssub.s32 1, %s1291
          %s1293 = smul.u32 %s32, %s1292
          %s1294 = smul.u32 8, %s1293
          %s1296 = ssub.s32 1024, 1024
          %1297 = vsyncadd %s1279, %s1296
          %s1298 = smul.addr %s31, 8
          %s1299 = sadd.s32 %s1294, %s1298
          %s1300 = smul.addr %s1299, 128
          %s1301 = scalar_lea.hbm %s2, %s1300
          %s1302 = sshll.u32 %s1282, 4
          %s1303 = int_to_ptr.vmem [resolvable:$true] %s1302
          %1308 = dma.vmem_to_hbm [thread:$0]  %s1303, 1024, %s1301, %s1279, 128, 128, 8
        $region48: #{tpu_custom_call.1} parent=27 // pred_fallthru
          _
        // Predicated region
        $region49: #{tpu_custom_call.1} parent=27 // pred_check
          %p1309 = pneg %p151
        $region50: #{tpu_custom_call.1} parent=27 // pred_check_branch
          %1311 = sbr.rel (%p1309) target = $region52
        $region51: #{tpu_custom_call.1} parent=27 // pred_region
          %s1313 = ssub.s32 128, 128
          %1314 = vsyncadd %s1284, %s1313
          %s1315 = smul.addr %s31, 128
          %s1316 = scalar_lea.hbm %s3, %s1315
          %s1318 = sshll.u32 %s1287, 4
          %s1319 = int_to_ptr.vmem [resolvable:$true] %s1318
          %1321 = dma.vmem_to_hbm [thread:$0]  %s1319, 128, %s1316, %s1284
        $region52: #{tpu_custom_call.1} parent=27 // pred_fallthru
          _
      $region28: #{tpu_custom_call.1} parent=5 // pred_fallthru
        _
      %p1322 = scmp.le.s32.totalorder 2, %s22
      // Predicated region
      $region53: #{tpu_custom_call.1} parent=5 // pred_check
        %p1323 = pneg %p1322
      $region54: #{tpu_custom_call.1} parent=5 // pred_check_branch
        %1325 = sbr.rel (%p1323) target = $region56
      $region55: #{tpu_custom_call.1} parent=5 // pred_region
        %s1326 = ssub.s32 %s22, 2
        // Predicated region
        $region57: #{tpu_custom_call.1} parent=55 // pred_check
          %p1327 = pneg %p131
        $region58: #{tpu_custom_call.1} parent=55 // pred_check_branch
          %1329 = sbr.rel (%p1327) target = $region60
        $region59: #{tpu_custom_call.1} parent=55 // pred_region
          %s1330 = sand.u32 %s116, 1
          %s1331 = scalar_lea.sflag [#allocation6], %s1330
          %s1332 = sand.u32 %s116, 1
          %s1333 = smul.addr %s1332, 64
          %s1334 = scalar_lea.vmem [#allocation9], %s1333
          %1335 = dma.done %s1331, 1024
        $region60: #{tpu_custom_call.1} parent=55 // pred_fallthru
          _
        // Predicated region
        $region61: #{tpu_custom_call.1} parent=55 // pred_check
          %p1336 = pneg %p157
        $region62: #{tpu_custom_call.1} parent=55 // pred_check_branch
          %1338 = sbr.rel (%p1336) target = $region64
        $region63: #{tpu_custom_call.1} parent=55 // pred_region
          %s1339 = sand.u32 %s142, 1
          %s1340 = scalar_lea.sflag [#allocation11], %s1339
          %s1341 = sand.u32 %s142, 1
          %s1342 = smul.addr %s1341, 8
          %s1343 = scalar_lea.vmem [#allocation10], %s1342
          %1344 = dma.done %s1340, 128
        $region64: #{tpu_custom_call.1} parent=55 // pred_fallthru
          _
      $region56: #{tpu_custom_call.1} parent=5 // pred_fallthru
        _
    $region6: #{tpu_custom_call.1} parent=1 // loop_footer
      %s26 = sadd.s32 1, %s22
    $region7: #{tpu_custom_call.1} parent=1 // loop_footer_branch
      %21 = sbr.rel target = $region3
    $region8: #{tpu_custom_call.1} parent=1 // loop_exit
      _
    %1345 = vsyncpa [#allocation5], 1
    %s1346 = scalar_lea.sflag [#allocation5], 1
    %1347 = vsyncpa %s1346, 1
    %1348 = vsyncpa [#allocation8], 1
    %s1349 = scalar_lea.sflag [#allocation8], 1
    %1350 = vsyncpa %s1349, 1
    %1351 = vsyncpa [#allocation6], 1
    %s1352 = scalar_lea.sflag [#allocation6], 1
    %1353 = vsyncpa %s1352, 1
    %1354 = vsyncpa [#allocation11], 1
    %s1355 = scalar_lea.sflag [#allocation11], 1
    %1356 = vsyncpa %s1355, 1

</llo_original>
